<compile_context>
chip_gen: v6e
topology: v6e:2x2x1
jax: 0.10.0
libtpu: 0.0.40
codegen_flags: <defaults>
</compile_context>

<pallas_src>
import functools

import jax
import jax.numpy as jnp
import numpy as np
from jax.experimental import pallas as pl
from jax.experimental.pallas import tpu as pltpu


def _round_up(v, m):
    return -(-v // m) * m


def _sublane_multiple(dtype):
    return {4: 8, 2: 16, 1: 32}[np.dtype(dtype).itemsize]


def _stacked_taps_ok(c, kk, compute_dtype):
    # Single GEMM over taps needs sublane-aligned (c % tile == 0) per-tap blocks
    # in the stacked (KK*C, TM) operand; only worth it for small C.
    return kk > 1 and c % _sublane_multiple(compute_dtype) == 0 and c <= 256


def _chip_defaults(row_tile):
    """(vmem_limit_bytes, row_tile) tuned per TPU generation (trace-time query)."""
    vmem = 128 * 1024 * 1024
    try:
        vmem = int(getattr(pltpu.get_tpu_info(), "vmem_capacity_bytes", vmem))
    except Exception:
        pass
    if vmem >= 100 * 1024 * 1024:            # v5e / v6e: 128 MiB VMEM
        return 96 * 1024 * 1024, max(row_tile, 1024)
    return 48 * 1024 * 1024, row_tile        # v7x: 64 MiB VMEM per TensorCore


def _pick_tiles(lout, off_max, row_tile, n_batch, bytes_per_col, vmem_budget):
    """Row tile TM (lanes) and halo tile TH; multiples of 128, TH | TM, TH >= off_max."""
    lout_r = _round_up(lout, 128)
    min_tm = _round_up(max(off_max, 128), 128)
    # big tiles + small halo fraction (aim TH/TM <= ~1/4 on wide 3x3 feature maps)
    want = max(row_tile, min(4 * off_max, 4 * row_tile))
    tm = min(_round_up(want, 128), lout_r)
    # keep the per-step double-buffered in/out working set inside ~half the VMEM budget
    cap = (vmem_budget // 2 // max(bytes_per_col, 1)) // 128 * 128
    tm = min(tm, max(cap, min_tm))
    tm = max(tm, min_tm)
    # expose >= 2 parallel grid tiles so both v7x TensorCores get work
    if n_batch == 1 and tm >= lout_r and lout_r >= 2 * min_tm:
        tm = max(min_tm, _round_up(-(-lout // 2), 128))
    # halo tile: smallest 128-multiple >= off_max that divides TM
    th = tm
    t = 128
    while t <= tm:
        if tm % t == 0 and t >= off_max:
            th = t
            break
        t += 128
    return tm, th


# ----------------------------- kernels --------------------------------------


def _conv_bn_1x1_kernel(x_ref, w_ref, b_ref, o_ref):
    # x_ref: (1, C, TM), w_ref: (OCp, C), b_ref: (OCp, 1) f32, o_ref: (1, OCp, TM)
    acc = jnp.dot(w_ref[...], x_ref[0], preferred_element_type=jnp.float32)
    o_ref[0] = (acc + b_ref[...]).astype(o_ref.dtype)


def _conv_bn_stacked_kernel(xa_ref, xb_ref, w_ref, b_ref, o_ref, *, offsets):
    # Small, sublane-aligned C: fold the KH*KW taps into the contraction dim.
    # xa_ref: (1, C, TM) row tile; xb_ref: (1, C, TH) halo; w_ref: (OCp, KK*C);
    # b_ref: (OCp, 1) f32; o_ref: (1, OCp, TM)
    tm = o_ref.shape[2]
    x = jnp.concatenate([xa_ref[0], xb_ref[0]], axis=1)                    # (C, TM+TH)
    xs = jnp.concatenate([x[:, off:off + tm] for off in offsets], axis=0)  # (KK*C, TM)
    acc = jnp.dot(w_ref[...], xs, preferred_element_type=jnp.float32)      # (OCp, TM)
    o_ref[0] = (acc + b_ref[...]).astype(o_ref.dtype)


def _conv_bn_pertap_kernel(xa_ref, xb_ref, w_ref, b_ref, o_ref, *, offsets):
    # General path: per-tap matmuls accumulated in f32.  With OCp padded only to
    # the sublane multiple the accumulator is a handful of vregs, so the adds stay
    # register-resident (no vst spills).
    # TODO(synk): on v7x accumulate in the MXU result buffer (matmul_push_rhs /
    #             matmul_acc_lhs / matmul_pop) and on v5e chunk OC in ~128-row
    #             blocks inside lax.fori_loop(unroll=True) for very large OC.
    # xa_ref: (1, C, TM); xb_ref: (1, C, TH); w_ref: (KK, OCp, C); b_ref: (OCp, 1)
    tm = o_ref.shape[2]
    x = jnp.concatenate([xa_ref[0], xb_ref[0]], axis=1)                    # (C, TM+TH)
    acc = jnp.dot(w_ref[0], x[:, offsets[0]:offsets[0] + tm],
                  preferred_element_type=jnp.float32)                      # (OCp, TM)
    for t in range(1, len(offsets)):
        off = offsets[t]                                                   # static int
        acc = acc + jnp.dot(w_ref[t], x[:, off:off + tm],
                            preferred_element_type=jnp.float32)
    o_ref[0] = (acc + b_ref[...]).astype(o_ref.dtype)


# -------------------------- one-time weight prep -----------------------------


def fold_conv_bn_params(weight, gamma, beta, running_mean, running_var, *,
                        eps=1e-5, compute_dtype=jnp.bfloat16, out_dtype=jnp.float32):
    """One-time (init-time) prep: fold eval-mode BN into the conv weights and a
    bias column, and lay the weights out for the Pallas kernel.  Call once and
    reuse the result in basic_conv2d_folded() to keep it out of the forward pass."""
    oc, c, kh, kw = weight.shape
    kk = kh * kw
    scale = gamma / jnp.sqrt(running_var + eps)                   # (OC,)
    bias = beta - running_mean * scale                            # (OC,)
    ocp = _round_up(oc, _sublane_multiple(out_dtype))             # sublane pad only
    w = weight * scale[:, None, None, None]
    if kk == 1:
        w_mat = jnp.pad(w.reshape(oc, c), ((0, ocp - oc), (0, 0)))            # (OCp, C)
    elif _stacked_taps_ok(c, kk, compute_dtype):
        # taps stacked into the contraction dim, tap-major columns: (OCp, KK*C)
        w_mat = w.transpose(0, 2, 3, 1).reshape(oc, kk * c)
        w_mat = jnp.pad(w_mat, ((0, ocp - oc), (0, 0)))
    else:
        # per-tap matrices, tap order ki*KW + kj: (KK, OCp, C)
        w_mat = w.transpose(2, 3, 0, 1).reshape(kk, oc, c)
        w_mat = jnp.pad(w_mat, ((0, 0), (0, ocp - oc), (0, 0)))
    w_mat = w_mat.astype(compute_dtype)
    bias_col = jnp.pad(bias, (0, ocp - oc)).reshape(ocp, 1).astype(jnp.float32)
    return w_mat, bias_col


# ------------------------------ forward pass ---------------------------------


@functools.partial(jax.jit, static_argnames=("out_channels", "kernel_size", "stride",
                                              "padding", "dilation", "row_tile",
                                              "out_dtype"))
def basic_conv2d_folded(x, w_mat, bias_col, *, out_channels, kernel_size, stride=1,
                        padding=0, dilation=1, row_tile=512, out_dtype=jnp.float32):
    """x: (N, C, H, W); w_mat/bias_col from fold_conv_bn_params.
    Returns BN(conv(x)) (eval-mode BN), shape (N, OC, OH, OW), dtype out_dtype."""
    n, c, h, w = x.shape
    oc = int(out_channels)
    kh = kw = int(kernel_size)
    d, pad, s = int(dilation), int(padding), int(stride)
    compute_dtype = w_mat.dtype
    ocp = bias_col.shape[0]

    hp, wp = h + 2 * pad, w + 2 * pad
    oh1, ow1 = hp - d * (kh - 1), wp - d * (kw - 1)       # stride-1 output grid
    oh, ow = (oh1 - 1) // s + 1, (ow1 - 1) // s + 1

    vmem_limit, row_tile = _chip_defaults(row_tile)
    offsets = tuple(ki * d * wp + kj * d for ki in range(kh) for kj in range(kw))
    off_max = offsets[-1]
    lout = oh1 * wp                                       # stride-1 rows per image (+ gutter)
    in_b = np.dtype(compute_dtype).itemsize
    out_b = np.dtype(out_dtype).itemsize
    bytes_per_col = 2 * c * in_b + 2 * ocp * out_b        # double-buffered in + out / column
    tm, th = _pick_tiles(lout, off_max, row_tile, n, bytes_per_col, vmem_limit)
    n_tiles = -(-lout // tm)

    # ---- flatten zero-padded input spatially so each tap is a 1-D shift -----
    xpad = jnp.pad(x.astype(compute_dtype), ((0, 0), (0, 0), (pad, pad), (pad, pad)))
    is_1x1 = (kh == 1 and kw == 1)
    lpad = n_tiles * tm if is_1x1 else (n_tiles + 1) * tm  # room for the last tile's halo
    assert lpad >= hp * wp
    xflat = jnp.pad(xpad.reshape(n, c, hp * wp), ((0, 0), (0, 0), (0, lpad - hp * wp)))

    out_spec = pl.BlockSpec((1, ocp, tm), lambda ni, mi: (ni, 0, mi))
    # Constant blocks (block index never changes): folded weights and bias.
    # TODO(synk): single-buffer these (pipeline_mode=pl.Buffered(1)) or split very
    #             large C~OC~1024 layers over an extra grid axis to save v7x VMEM.
    b_spec = pl.BlockSpec((ocp, 1), lambda ni, mi: (0, 0))

    if is_1x1:
        # 1x1 fast path: no halo binding, no in-kernel concatenate
        kernel = _conv_bn_1x1_kernel
        in_specs = [pl.BlockSpec((1, c, tm), lambda ni, mi: (ni, 0, mi)),
                    pl.BlockSpec(w_mat.shape, lambda ni, mi: (0, 0)),
                    b_spec]
        operands = (xflat, w_mat, bias_col)
    else:
        if w_mat.ndim == 2:      # stacked taps -> single GEMM (small aligned C)
            assert w_mat.shape == (ocp, kh * kw * c)
            kernel = functools.partial(_conv_bn_stacked_kernel, offsets=offsets)
            w_spec = pl.BlockSpec(w_mat.shape, lambda ni, mi: (0, 0))
        else:                    # per-tap matmuls (general / large C)
            assert w_mat.shape == (kh * kw, ocp, c)
            kernel = functools.partial(_conv_bn_pertap_kernel, offsets=offsets)
            w_spec = pl.BlockSpec(w_mat.shape, lambda ni, mi: (0, 0, 0))
        in_specs = [
            # main row tile
            pl.BlockSpec((1, c, tm), lambda ni, mi: (ni, 0, mi)),
            # halo: the next TH flat rows of the SAME array (TH | TM, so the element
            # offset (mi+1)*TM is expressible with plain block indices)
            pl.BlockSpec((1, c, th), lambda ni, mi: (ni, 0, (mi + 1) * (tm // th))),
            w_spec, b_spec]
        operands = (xflat, xflat, w_mat, bias_col)

    y_wide = pl.pallas_call(
        kernel,
        out_shape=jax.ShapeDtypeStruct((n, ocp, n_tiles * tm), out_dtype),
        grid_spec=pltpu.PrefetchScalarGridSpec(
            num_scalar_prefetch=0,
            grid=(n, n_tiles),
            in_specs=in_specs,
            out_specs=out_spec),
        compiler_params=pltpu.CompilerParams(
            dimension_semantics=("parallel", "parallel"),
            vmem_limit_bytes=vmem_limit),
    )(*operands)

    # crop padded channels (no-op when OC is already a sublane multiple) and the
    # gutter columns, reshape back to NCHW
    y = y_wide[:, :oc, :lout].reshape(n, oc, oh1, wp)[:, :, :, :ow1]
    if s > 1:
        # TODO(synk): native strided tiling; BasicConv2d in HarDMSEG always uses
        # stride=1, so stride>1 is computed on the stride-1 grid and subsampled.
        y = y[:, :, ::s, ::s][:, :, :oh, :ow]
    return y


def basic_conv2d(x, weight, gamma, beta, running_mean, running_var, *,
                 kernel_size, stride=1, padding=0, dilation=1, eps=1e-5,
                 compute_dtype=jnp.bfloat16, out_dtype=jnp.float32, row_tile=512):
    """Convenience path (fold + apply).  For inference, call fold_conv_bn_params
    once at model init and reuse basic_conv2d_folded directly."""
    w_mat, bias_col = fold_conv_bn_params(
        weight, gamma, beta, running_mean, running_var, eps=eps,
        compute_dtype=compute_dtype, out_dtype=out_dtype)
    return basic_conv2d_folded(
        x, w_mat, bias_col, out_channels=weight.shape[0], kernel_size=kernel_size,
        stride=stride, padding=padding, dilation=dilation, row_tile=row_tile,
        out_dtype=out_dtype)


if __name__ == "__main__":
    # Module config: BasicConv2d(in_planes=4, out_planes=8, kernel_size=3, stride=1, padding=1)
    N, C, H, W = 2, 4, 16, 16
    OC, KS, STRIDE, PAD, DIL = 8, 3, 1, 1, 1
    EPS = 1e-5

    key = jax.random.PRNGKey(0)
    kx, kw_, kg, kb, km, kv = jax.random.split(key, 6)

    x = jax.random.normal(kx, (N, C, H, W), dtype=jnp.float32)
    weight = jax.random.normal(kw_, (OC, C, KS, KS), dtype=jnp.float32) * 0.1
    gamma = 1.0 + 0.1 * jax.random.normal(kg, (OC,), dtype=jnp.float32)
    beta = 0.1 * jax.random.normal(kb, (OC,), dtype=jnp.float32)
    running_mean = 0.05 * jax.random.normal(km, (OC,), dtype=jnp.float32)
    running_var = 1.0 + 0.1 * jax.nn.softplus(jax.random.normal(kv, (OC,), dtype=jnp.float32))

    scale = gamma / jnp.sqrt(running_var + EPS)
    bias = beta - running_mean * scale
    w_folded = weight * scale[:, None, None, None]

    def xla_ref(xq, wq):
        out = jax.lax.conv_general_dilated(
            xq, wq, window_strides=(STRIDE, STRIDE),
            padding=[(PAD, PAD), (PAD, PAD)], rhs_dilation=(DIL, DIL),
            dimension_numbers=("NCHW", "OIHW", "NCHW"))
        return out + bias.reshape(1, OC, 1, 1)

    # 1) f32 compute path vs f32 XLA reference (structural correctness)
    out32 = basic_conv2d(x, weight, gamma, beta, running_mean, running_var,
                         kernel_size=KS, stride=STRIDE, padding=PAD, dilation=DIL,
                         eps=EPS, compute_dtype=jnp.float32)
    out32 = jax.block_until_ready(out32)
    ref32 = xla_ref(x, w_folded)
    np.testing.assert_allclose(np.asarray(out32), np.asarray(ref32), rtol=1e-3, atol=1e-3)

    # 2) default bf16 fast path with the weight prep hoisted out of the forward pass
    w_mat, bias_col = fold_conv_bn_params(weight, gamma, beta, running_mean,
                                          running_var, eps=EPS)   # bf16 compute, done once
    out16 = basic_conv2d_folded(x, w_mat, bias_col, out_channels=OC, kernel_size=KS,
                                stride=STRIDE, padding=PAD, dilation=DIL)
    out16 = jax.block_until_ready(out16)
    refq = xla_ref(x.astype(jnp.bfloat16).astype(jnp.float32),
                   w_folded.astype(jnp.bfloat16).astype(jnp.float32))
    np.testing.assert_allclose(np.asarray(out16), np.asarray(refq), rtol=2e-2, atol=2e-2)

    # 3) 1x1 fast path (a very common BasicConv2d shape in HarDMSEG), f32 compute
    w1 = jax.random.normal(kw_, (OC, C, 1, 1), dtype=jnp.float32) * 0.1
    out1 = basic_conv2d(x, w1, gamma, beta, running_mean, running_var,
                        kernel_size=1, stride=1, padding=0, dilation=1, eps=EPS,
                        compute_dtype=jnp.float32)
    out1 = jax.block_until_ready(out1)
    ref1 = jax.lax.conv_general_dilated(
        x, w1 * scale[:, None, None, None], window_strides=(1, 1),
        padding=[(0, 0), (0, 0)],
        dimension_numbers=("NCHW", "OIHW", "NCHW")) + bias.reshape(1, OC, 1, 1)
    np.testing.assert_allclose(np.asarray(out1), np.asarray(ref1), rtol=1e-3, atol=1e-3)

    print("KERNEL_OK")
</pallas_src>

<mosaic_0001>
module attributes {stable_mosaic.version = 11 : i64} {
  func.func @_conv_bn_pertap_kernel(%arg0: i32, %arg1: i32, %arg2: memref<1x4x384xf32, #tpu.memory_space<vmem>>, %arg3: memref<1x4x128xf32, #tpu.memory_space<vmem>>, %arg4: memref<9x8x4xf32, #tpu.memory_space<vmem>>, %arg5: memref<8x1xf32, #tpu.memory_space<vmem>>, %arg6: memref<1x8x384xf32, #tpu.memory_space<vmem>>) attributes {dimension_semantics = [#tpu.dimension_semantics<parallel>, #tpu.dimension_semantics<parallel>], iteration_bounds = array<i64: 2, 1>, scalar_prefetch = 0 : i64, scratch_operands = 0 : i64, tpu.core_type = #tpu.core_type<tc>, window_params = [{transform_indices = @transform_0, window_bounds = array<i64: 1, 4, 384>}, {transform_indices = @transform_1, window_bounds = array<i64: 1, 4, 128>}, {pipeline_mode = #tpu.pipeline_mode<synchronous>, transform_indices = @transform_2, window_bounds = array<i64: 9, 8, 4>}, {pipeline_mode = #tpu.pipeline_mode<synchronous>, transform_indices = @transform_3, window_bounds = array<i64: 8, 1>}, {transform_indices = @transform_4, window_bounds = array<i64: 1, 8, 384>}]} {
    %c0 = arith.constant 0 : index
    %c0_0 = arith.constant 0 : index
    %c0_1 = arith.constant 0 : index
    %0 = vector.load %arg2[%c0, %c0_0, %c0_1] : memref<1x4x384xf32, #tpu.memory_space<vmem>>, vector<1x4x384xf32>
    %1 = vector.shape_cast %0 : vector<1x4x384xf32> to vector<4x384xf32>
    %c0_2 = arith.constant 0 : index
    %c0_3 = arith.constant 0 : index
    %c0_4 = arith.constant 0 : index
    %2 = vector.load %arg3[%c0_2, %c0_3, %c0_4] : memref<1x4x128xf32, #tpu.memory_space<vmem>>, vector<1x4x128xf32>
    %3 = vector.shape_cast %2 : vector<1x4x128xf32> to vector<4x128xf32>
    %4 = tpu.concatenate %1, %3 in 1 : vector<4x384xf32>, vector<4x128xf32> -> vector<4x512xf32>
    %c0_5 = arith.constant 0 : index
    %c0_6 = arith.constant 0 : index
    %c0_7 = arith.constant 0 : index
    %5 = vector.load %arg4[%c0_5, %c0_6, %c0_7] : memref<9x8x4xf32, #tpu.memory_space<vmem>>, vector<1x8x4xf32>
    %6 = vector.shape_cast %5 : vector<1x8x4xf32> to vector<8x4xf32>
    %7 = vector.extract_strided_slice %4 {offsets = [0, 0], sizes = [4, 384], strides = [1, 1]} : vector<4x512xf32> to vector<4x384xf32>
    %cst = arith.constant dense<0.000000e+00> : vector<8x384xf32>
    %8 = tpu.matmul %6, %7, %cst {dimension_numbers = #tpu.dot_dimension_numbers<[1], [0], [0], [1], [0, 0, 1, 1], [], []>} : vector<8x4xf32>, vector<4x384xf32>, vector<8x384xf32> -> vector<8x384xf32>
    %c1 = arith.constant 1 : index
    %c0_8 = arith.constant 0 : index
    %c0_9 = arith.constant 0 : index
    %9 = vector.load %arg4[%c1, %c0_8, %c0_9] : memref<9x8x4xf32, #tpu.memory_space<vmem>>, vector<1x8x4xf32>
    %10 = vector.shape_cast %9 : vector<1x8x4xf32> to vector<8x4xf32>
    %11 = vector.extract_strided_slice %4 {offsets = [0, 1], sizes = [4, 384], strides = [1, 1]} : vector<4x512xf32> to vector<4x384xf32>
    %cst_10 = arith.constant dense<0.000000e+00> : vector<8x384xf32>
    %12 = tpu.matmul %10, %11, %cst_10 {dimension_numbers = #tpu.dot_dimension_numbers<[1], [0], [0], [1], [0, 0, 1, 1], [], []>} : vector<8x4xf32>, vector<4x384xf32>, vector<8x384xf32> -> vector<8x384xf32>
    %13 = arith.addf %8, %12 : vector<8x384xf32>
    %c2 = arith.constant 2 : index
    %c0_11 = arith.constant 0 : index
    %c0_12 = arith.constant 0 : index
    %14 = vector.load %arg4[%c2, %c0_11, %c0_12] : memref<9x8x4xf32, #tpu.memory_space<vmem>>, vector<1x8x4xf32>
    %15 = vector.shape_cast %14 : vector<1x8x4xf32> to vector<8x4xf32>
    %16 = vector.extract_strided_slice %4 {offsets = [0, 2], sizes = [4, 384], strides = [1, 1]} : vector<4x512xf32> to vector<4x384xf32>
    %cst_13 = arith.constant dense<0.000000e+00> : vector<8x384xf32>
    %17 = tpu.matmul %15, %16, %cst_13 {dimension_numbers = #tpu.dot_dimension_numbers<[1], [0], [0], [1], [0, 0, 1, 1], [], []>} : vector<8x4xf32>, vector<4x384xf32>, vector<8x384xf32> -> vector<8x384xf32>
    %18 = arith.addf %13, %17 : vector<8x384xf32>
    %c3 = arith.constant 3 : index
    %c0_14 = arith.constant 0 : index
    %c0_15 = arith.constant 0 : index
    %19 = vector.load %arg4[%c3, %c0_14, %c0_15] : memref<9x8x4xf32, #tpu.memory_space<vmem>>, vector<1x8x4xf32>
    %20 = vector.shape_cast %19 : vector<1x8x4xf32> to vector<8x4xf32>
    %21 = vector.extract_strided_slice %4 {offsets = [0, 18], sizes = [4, 384], strides = [1, 1]} : vector<4x512xf32> to vector<4x384xf32>
    %cst_16 = arith.constant dense<0.000000e+00> : vector<8x384xf32>
    %22 = tpu.matmul %20, %21, %cst_16 {dimension_numbers = #tpu.dot_dimension_numbers<[1], [0], [0], [1], [0, 0, 1, 1], [], []>} : vector<8x4xf32>, vector<4x384xf32>, vector<8x384xf32> -> vector<8x384xf32>
    %23 = arith.addf %18, %22 : vector<8x384xf32>
    %c4 = arith.constant 4 : index
    %c0_17 = arith.constant 0 : index
    %c0_18 = arith.constant 0 : index
    %24 = vector.load %arg4[%c4, %c0_17, %c0_18] : memref<9x8x4xf32, #tpu.memory_space<vmem>>, vector<1x8x4xf32>
    %25 = vector.shape_cast %24 : vector<1x8x4xf32> to vector<8x4xf32>
    %26 = vector.extract_strided_slice %4 {offsets = [0, 19], sizes = [4, 384], strides = [1, 1]} : vector<4x512xf32> to vector<4x384xf32>
    %cst_19 = arith.constant dense<0.000000e+00> : vector<8x384xf32>
    %27 = tpu.matmul %25, %26, %cst_19 {dimension_numbers = #tpu.dot_dimension_numbers<[1], [0], [0], [1], [0, 0, 1, 1], [], []>} : vector<8x4xf32>, vector<4x384xf32>, vector<8x384xf32> -> vector<8x384xf32>
    %28 = arith.addf %23, %27 : vector<8x384xf32>
    %c5 = arith.constant 5 : index
    %c0_20 = arith.constant 0 : index
    %c0_21 = arith.constant 0 : index
    %29 = vector.load %arg4[%c5, %c0_20, %c0_21] : memref<9x8x4xf32, #tpu.memory_space<vmem>>, vector<1x8x4xf32>
    %30 = vector.shape_cast %29 : vector<1x8x4xf32> to vector<8x4xf32>
    %31 = vector.extract_strided_slice %4 {offsets = [0, 20], sizes = [4, 384], strides = [1, 1]} : vector<4x512xf32> to vector<4x384xf32>
    %cst_22 = arith.constant dense<0.000000e+00> : vector<8x384xf32>
    %32 = tpu.matmul %30, %31, %cst_22 {dimension_numbers = #tpu.dot_dimension_numbers<[1], [0], [0], [1], [0, 0, 1, 1], [], []>} : vector<8x4xf32>, vector<4x384xf32>, vector<8x384xf32> -> vector<8x384xf32>
    %33 = arith.addf %28, %32 : vector<8x384xf32>
    %c6 = arith.constant 6 : index
    %c0_23 = arith.constant 0 : index
    %c0_24 = arith.constant 0 : index
    %34 = vector.load %arg4[%c6, %c0_23, %c0_24] : memref<9x8x4xf32, #tpu.memory_space<vmem>>, vector<1x8x4xf32>
    %35 = vector.shape_cast %34 : vector<1x8x4xf32> to vector<8x4xf32>
    %36 = vector.extract_strided_slice %4 {offsets = [0, 36], sizes = [4, 384], strides = [1, 1]} : vector<4x512xf32> to vector<4x384xf32>
    %cst_25 = arith.constant dense<0.000000e+00> : vector<8x384xf32>
    %37 = tpu.matmul %35, %36, %cst_25 {dimension_numbers = #tpu.dot_dimension_numbers<[1], [0], [0], [1], [0, 0, 1, 1], [], []>} : vector<8x4xf32>, vector<4x384xf32>, vector<8x384xf32> -> vector<8x384xf32>
    %38 = arith.addf %33, %37 : vector<8x384xf32>
    %c7 = arith.constant 7 : index
    %c0_26 = arith.constant 0 : index
    %c0_27 = arith.constant 0 : index
    %39 = vector.load %arg4[%c7, %c0_26, %c0_27] : memref<9x8x4xf32, #tpu.memory_space<vmem>>, vector<1x8x4xf32>
    %40 = vector.shape_cast %39 : vector<1x8x4xf32> to vector<8x4xf32>
    %41 = vector.extract_strided_slice %4 {offsets = [0, 37], sizes = [4, 384], strides = [1, 1]} : vector<4x512xf32> to vector<4x384xf32>
    %cst_28 = arith.constant dense<0.000000e+00> : vector<8x384xf32>
    %42 = tpu.matmul %40, %41, %cst_28 {dimension_numbers = #tpu.dot_dimension_numbers<[1], [0], [0], [1], [0, 0, 1, 1], [], []>} : vector<8x4xf32>, vector<4x384xf32>, vector<8x384xf32> -> vector<8x384xf32>
    %43 = arith.addf %38, %42 : vector<8x384xf32>
    %c8 = arith.constant 8 : index
    %c0_29 = arith.constant 0 : index
    %c0_30 = arith.constant 0 : index
    %44 = vector.load %arg4[%c8, %c0_29, %c0_30] : memref<9x8x4xf32, #tpu.memory_space<vmem>>, vector<1x8x4xf32>
    %45 = vector.shape_cast %44 : vector<1x8x4xf32> to vector<8x4xf32>
    %46 = vector.extract_strided_slice %4 {offsets = [0, 38], sizes = [4, 384], strides = [1, 1]} : vector<4x512xf32> to vector<4x384xf32>
    %cst_31 = arith.constant dense<0.000000e+00> : vector<8x384xf32>
    %47 = tpu.matmul %45, %46, %cst_31 {dimension_numbers = #tpu.dot_dimension_numbers<[1], [0], [0], [1], [0, 0, 1, 1], [], []>} : vector<8x4xf32>, vector<4x384xf32>, vector<8x384xf32> -> vector<8x384xf32>
    %48 = arith.addf %43, %47 : vector<8x384xf32>
    %c0_32 = arith.constant 0 : index
    %c0_33 = arith.constant 0 : index
    %49 = vector.load %arg5[%c0_32, %c0_33] : memref<8x1xf32, #tpu.memory_space<vmem>>, vector<8x1xf32>
    %50 = vector.broadcast %49 : vector<8x1xf32> to vector<8x384xf32>
    %51 = arith.addf %48, %50 : vector<8x384xf32>
    %c0_34 = arith.constant 0 : index
    %c0_35 = arith.constant 0 : index
    %c0_36 = arith.constant 0 : index
    %52 = vector.load %arg6[%c0_34, %c0_35, %c0_36] : memref<1x8x384xf32, #tpu.memory_space<vmem>>, vector<1x8x384xf32>
    %53 = vector.shape_cast %52 : vector<1x8x384xf32> to vector<8x384xf32>
    %54 = vector.shape_cast %51 : vector<8x384xf32> to vector<1x8x384xf32>
    tpu.vector_store %arg6[%c0_34, %c0_35, %c0_36], %54 {strides = array<i32>} : memref<1x8x384xf32, #tpu.memory_space<vmem>>, vector<1x8x384xf32>,
    return
  }
  func.func @transform_0(%arg0: i32, %arg1: i32) -> (i32, i32, i32) {
    %c0_i32 = arith.constant 0 : i32
    %c0_i32_0 = arith.constant 0 : i32
    return %arg0, %c0_i32, %arg1 : i32, i32, i32
  }
  func.func @transform_1(%arg0: i32, %arg1: i32) -> (i32, i32, i32) {
    %c1_i32 = arith.constant 1 : i32
    %0 = arith.addi %arg1, %c1_i32 : i32
    %c3_i32 = arith.constant 3 : i32
    %1 = arith.muli %0, %c3_i32 : i32
    %c0_i32 = arith.constant 0 : i32
    %c0_i32_0 = arith.constant 0 : i32
    return %arg0, %c0_i32, %1 : i32, i32, i32
  }
  func.func @transform_2(%arg0: i32, %arg1: i32) -> (i32, i32, i32) {
    %c0_i32 = arith.constant 0 : i32
    %c0_i32_0 = arith.constant 0 : i32
    %c0_i32_1 = arith.constant 0 : i32
    %c0_i32_2 = arith.constant 0 : i32
    return %c0_i32, %c0_i32_0, %c0_i32_1 : i32, i32, i32
  }
  func.func @transform_3(%arg0: i32, %arg1: i32) -> (i32, i32) {
    %c0_i32 = arith.constant 0 : i32
    %c0_i32_0 = arith.constant 0 : i32
    %c0_i32_1 = arith.constant 0 : i32
    return %c0_i32, %c0_i32_0 : i32, i32
  }
  func.func @transform_4(%arg0: i32, %arg1: i32) -> (i32, i32, i32) {
    %c0_i32 = arith.constant 0 : i32
    %c0_i32_0 = arith.constant 0 : i32
    return %arg0, %c0_i32, %arg1 : i32, i32, i32
  }
}

</mosaic_0001>

<llo_original>
// kernel: basic_conv2d_folded.1
$region0: #{basic_conv2d_folded.1}
  #allocation0 [shape = 'u32[]', space=smem, size = 0x4, offset = 0x4, fixed_abs, tag = 'smem constant byte address 0x4 - core index']
  #allocation1 [shape = 'u32[144,128]{1,0:T(1,128)}', space=vmem, size = 0x12000, scoped, tag = 'internal scratch']
  %s0 = inlined_call_operand.vmem [shape: f32[2,4,768], index: 0, kind: input, shape index: {}, may-alias: {0,1}]
  %s1 = inlined_call_operand.vmem [shape: f32[2,4,768], index: 1, kind: input, shape index: {}, may-alias: {0,1}]
  %s2 = inlined_call_operand.vmem [shape: f32[9,8,4], index: 2, kind: input, shape index: {}]
  %s3 = inlined_call_operand.vmem [shape: f32[8,1], index: 3, kind: input, shape index: {}]
  %s4 = inlined_call_operand.vmem [shape: f32[2,8,384], index: 4, kind: output, shape index: {}]
  %s5 = sld [smem:[#allocation0]]
  $region49: #{basic_conv2d_folded.1} parent=0
    _
  %s7 = ssub.s32 1, %s5
  %s8 = scalar_select 0, %s7, %s5
  loop: start=0, step=1, limit=4
  $region2: #{basic_conv2d_folded.1} parent=0 // loop_pre_header
    _
  $region3: #{basic_conv2d_folded.1} parent=0 // loop_header
    %s10 = sphi 0, %s14
    %p11 = scmp.ge.s32.totalorder %s10, 4
    %s17 = sphi 0, %s29
    %s18 = sphi 0, %s25
    %s19 = sphi 0, %s17
    %s20 = sphi 0, %s18
    %s21 = sphi 0, %s19
    %s22 = sphi 0, %s20
    %s34 = sphi 0, %s36
    %s37 = sphi 0, %s34
    %s38 = sphi 0, %s37
    %s54 = sphi 0, %s38
    %s66 = sphi 0, %s68
    %s69 = sphi 0, %s66
    %s70 = sphi 0, %s69
    %s86 = sphi 0, %s70
    %s90 = sphi 0, %s90
    %s92 = sphi 0, %s90
    %s93 = sphi 0, %s92
    %s107 = sphi 0, %s93
    %s111 = sphi 0, %s111
    %s113 = sphi 0, %s111
    %s114 = sphi 0, %s113
    %s128 = sphi 0, %s114
    %s136 = sphi 0, %s138
    %s139 = sphi 0, %s136
    %s140 = sphi 0, %s139
    %s156 = sphi 0, %s140
  $region4: #{basic_conv2d_folded.1} parent=0 // loop_header_branch
    %13 = sbr.rel (%p11) target = $region8
  $region5: #{basic_conv2d_folded.1} parent=0 // loop_body
    %s15 = ssub.s32 %s10, 1
    %s16 = ssub.s32 %s10, 2
    %s23 = sadd.s32 1, %s18
    %p24 = scmp.ge.s32.totalorder %s23, 1
    %s25 = scalar_select %p24, 0, %s23
    %s26 = sadd.s32 1, %s17
    %s27 = scalar_select %p24, %s26, %s17
    %p28 = scmp.ge.s32.totalorder %s27, 2
    %s29 = scalar_select %p28, 0, %s27
    %s30 = ssub.s32 %s17, %s29
    %s31 = ssub.s32 %s18, %s25
    %s32 = sor.u32 %s30, %s31
    %p33 = scmp.eq.s32.totalorder %s32, 0
    %s35 = sadd.s32 %s34, 1
    %s36 = scalar_select %p33, %s34, %s35
    %p39 = pneg %p33
    %p40 = scmp.eq.s32.totalorder %s10, 1
    %p41 = por %p39, %p40
    %p42 = scmp.ne.s32.totalorder %s34, %s37
    %p43 = scmp.eq.s32.totalorder %s10, 0
    %p44 = por %p42, %p43
    %p45 = scmp.ne.s32.totalorder %s34, %s37
    %p46 = scmp.eq.s32.totalorder %s15, 1
    %p47 = por %p45, %p46
    %p48 = scmp.ne.s32.totalorder %s37, %s38
    %p49 = scmp.eq.s32.totalorder %s15, 0
    %p50 = por %p48, %p49
    %p51 = scmp.ne.s32.totalorder %s37, %s38
    %p52 = scmp.eq.s32.totalorder %s16, 1
    %p53 = por %p51, %p52
    %p55 = scmp.ne.s32.totalorder %s38, %s54
    %p56 = scmp.eq.s32.totalorder %s16, 0
    %p57 = por %p55, %p56
    %s58 = sadd.s32 %s18, 1
    %s59 = smul.u32 %s58, 3
    %s60 = sadd.s32 %s25, 1
    %s61 = smul.u32 %s60, 3
    %s62 = ssub.s32 %s17, %s29
    %s63 = ssub.s32 %s59, %s61
    %s64 = sor.u32 %s62, %s63
    %p65 = scmp.eq.s32.totalorder %s64, 0
    %s67 = sadd.s32 %s66, 1
    %s68 = scalar_select %p65, %s66, %s67
    %p71 = pneg %p65
    %p72 = scmp.eq.s32.totalorder %s10, 1
    %p73 = por %p71, %p72
    %p74 = scmp.ne.s32.totalorder %s66, %s69
    %p75 = scmp.eq.s32.totalorder %s10, 0
    %p76 = por %p74, %p75
    %p77 = scmp.ne.s32.totalorder %s66, %s69
    %p78 = scmp.eq.s32.totalorder %s15, 1
    %p79 = por %p77, %p78
    %p80 = scmp.ne.s32.totalorder %s69, %s70
    %p81 = scmp.eq.s32.totalorder %s15, 0
    %p82 = por %p80, %p81
    %p83 = scmp.ne.s32.totalorder %s69, %s70
    %p84 = scmp.eq.s32.totalorder %s16, 1
    %p85 = por %p83, %p84
    %p87 = scmp.ne.s32.totalorder %s70, %s86
    %p88 = scmp.eq.s32.totalorder %s16, 0
    %p89 = por %p87, %p88
    %s91 = sadd.s32 %s90, 1
    %p94 = scmp.eq.s32.totalorder %s10, 1
    %p95 = scmp.ne.s32.totalorder %s90, %s92
    %p96 = scmp.eq.s32.totalorder %s10, 0
    %p97 = por %p95, %p96
    %p98 = scmp.ne.s32.totalorder %s90, %s92
    %p99 = scmp.eq.s32.totalorder %s15, 1
    %p100 = por %p98, %p99
    %p101 = scmp.ne.s32.totalorder %s92, %s93
    %p102 = scmp.eq.s32.totalorder %s15, 0
    %p103 = por %p101, %p102
    %p104 = scmp.ne.s32.totalorder %s92, %s93
    %p105 = scmp.eq.s32.totalorder %s16, 1
    %p106 = por %p104, %p105
    %p108 = scmp.ne.s32.totalorder %s93, %s107
    %p109 = scmp.eq.s32.totalorder %s16, 0
    %p110 = por %p108, %p109
    %s112 = sadd.s32 %s111, 1
    %p115 = scmp.eq.s32.totalorder %s10, 1
    %p116 = scmp.ne.s32.totalorder %s111, %s113
    %p117 = scmp.eq.s32.totalorder %s10, 0
    %p118 = por %p116, %p117
    %p119 = scmp.ne.s32.totalorder %s111, %s113
    %p120 = scmp.eq.s32.totalorder %s15, 1
    %p121 = por %p119, %p120
    %p122 = scmp.ne.s32.totalorder %s113, %s114
    %p123 = scmp.eq.s32.totalorder %s15, 0
    %p124 = por %p122, %p123
    %p125 = scmp.ne.s32.totalorder %s113, %s114
    %p126 = scmp.eq.s32.totalorder %s16, 1
    %p127 = por %p125, %p126
    %p129 = scmp.ne.s32.totalorder %s114, %s128
    %p130 = scmp.eq.s32.totalorder %s16, 0
    %p131 = por %p129, %p130
    %s132 = ssub.s32 %s17, %s29
    %s133 = ssub.s32 %s18, %s25
    %s134 = sor.u32 %s132, %s133
    %p135 = scmp.eq.s32.totalorder %s134, 0
    %s137 = sadd.s32 %s136, 1
    %s138 = scalar_select %p135, %s136, %s137
    %p141 = pneg %p135
    %p142 = scmp.eq.s32.totalorder %s10, 1
    %p143 = por %p141, %p142
    %p144 = scmp.ne.s32.totalorder %s136, %s139
    %p145 = scmp.eq.s32.totalorder %s10, 0
    %p146 = por %p144, %p145
    %p147 = scmp.ne.s32.totalorder %s136, %s139
    %p148 = scmp.eq.s32.totalorder %s15, 1
    %p149 = por %p147, %p148
    %p150 = scmp.ne.s32.totalorder %s139, %s140
    %p151 = scmp.eq.s32.totalorder %s15, 0
    %p152 = por %p150, %p151
    %p153 = scmp.ne.s32.totalorder %s139, %s140
    %p154 = scmp.eq.s32.totalorder %s16, 1
    %p155 = por %p153, %p154
    %p157 = scmp.ne.s32.totalorder %s140, %s156
    %p158 = scmp.eq.s32.totalorder %s16, 0
    %p159 = por %p157, %p158
    %p160 = scmp.le.s32.totalorder 1, %s10
    %p161 = scmp.lt.s32.totalorder %s10, 3
    %p162 = pnand %p160, %p161
    %p163 = pneg %p162
    // Predicated region
    $region9: #{basic_conv2d_folded.1} parent=5 // pred_check
      _
    $region10: #{basic_conv2d_folded.1} parent=5 // pred_check_branch
      %165 = sbr.rel (%p162) target = $region12
    $region11: #{basic_conv2d_folded.1} parent=5 // pred_region
      %s166 = ssub.s32 %s10, 1
      // Predicated region
      $region13: #{basic_conv2d_folded.1} parent=11 // pred_check
        %p167 = pneg %p103
      $region14: #{basic_conv2d_folded.1} parent=11 // pred_check_branch
        %169 = sbr.rel (%p167) target = $region16
      $region15: #{basic_conv2d_folded.1} parent=11 // pred_region
        _
      $region16: #{basic_conv2d_folded.1} parent=11 // pred_fallthru
        _
      // Predicated region
      $region17: #{basic_conv2d_folded.1} parent=11 // pred_check
        %p170 = pneg %p124
      $region18: #{basic_conv2d_folded.1} parent=11 // pred_check_branch
        %172 = sbr.rel (%p170) target = $region20
      $region19: #{basic_conv2d_folded.1} parent=11 // pred_region
        _
      $region20: #{basic_conv2d_folded.1} parent=11 // pred_fallthru
        _
    $region12: #{basic_conv2d_folded.1} parent=5 // pred_fallthru
      _
    %p173 = scmp.lt.s32.totalorder %s10, 2
    // Predicated region
    $region21: #{basic_conv2d_folded.1} parent=5 // pred_check
      %p174 = pneg %p173
    $region22: #{basic_conv2d_folded.1} parent=5 // pred_check_branch
      %176 = sbr.rel (%p174) target = $region24
    $region23: #{basic_conv2d_folded.1} parent=5 // pred_region
      // Predicated region
      $region25: #{basic_conv2d_folded.1} parent=23 // pred_check
        %p177 = pneg %p44
      $region26: #{basic_conv2d_folded.1} parent=23 // pred_check_branch
        %179 = sbr.rel (%p177) target = $region28
      $region27: #{basic_conv2d_folded.1} parent=23 // pred_region
        %s180 = smul.u32 3, %s18
        %p181 = scmp.lt.s32.totalorder %s17, 1
        %s182 = scalar_select %p181, %s17, 1
        %p183 = scmp.lt.s32.totalorder %s180, 5
        %s184 = scalar_select %p183, %s180, 5
        %s185 = smul.addr %s182, 6
        %s186 = sadd.s32 %s184, %s185
        %s187 = smul.addr %s186, 4
        %s188 = scalar_lea.vmem %s0, %s187
        %s189 = smul.u32 3, %s18
      $region28: #{basic_conv2d_folded.1} parent=23 // pred_fallthru
        _
      // Predicated region
      $region29: #{basic_conv2d_folded.1} parent=23 // pred_check
        %p190 = pneg %p76
      $region30: #{basic_conv2d_folded.1} parent=23 // pred_check_branch
        %192 = sbr.rel (%p190) target = $region32
      $region31: #{basic_conv2d_folded.1} parent=23 // pred_region
        %s193 = sadd.s32 %s18, 1
        %s194 = smul.u32 %s193, 3
        %p195 = scmp.lt.s32.totalorder %s17, 1
        %s196 = scalar_select %p195, %s17, 1
        %p197 = scmp.lt.s32.totalorder %s194, 5
        %s198 = scalar_select %p197, %s194, 5
        %s199 = smul.addr %s196, 6
        %s200 = sadd.s32 %s198, %s199
        %s201 = smul.addr %s200, 4
        %s202 = scalar_lea.vmem %s1, %s201
        %s203 = sadd.s32 %s18, 1
        %s204 = smul.u32 %s203, 3
      $region32: #{basic_conv2d_folded.1} parent=23 // pred_fallthru
        _
    $region24: #{basic_conv2d_folded.1} parent=5 // pred_fallthru
      _
    %p205 = scmp.le.s32.totalorder 1, %s10
    %p206 = scmp.lt.s32.totalorder %s10, 3
    %p207 = pnand %p205, %p206
    %p208 = pneg %p207
    // Predicated region
    $region33: #{basic_conv2d_folded.1} parent=5 // pred_check
      _
    $region34: #{basic_conv2d_folded.1} parent=5 // pred_check_branch
      %210 = sbr.rel (%p207) target = $region36
    $region35: #{basic_conv2d_folded.1} parent=5 // pred_region
      %s211 = ssub.s32 %s10, 1
      %s212 = smul.u32 3, %s20
      %p213 = scmp.lt.s32.totalorder %s19, 1
      %s214 = scalar_select %p213, %s19, 1
      %p215 = scmp.lt.s32.totalorder %s212, 5
      %s216 = scalar_select %p215, %s212, 5
      %s217 = smul.addr %s214, 6
      %s218 = sadd.s32 %s216, %s217
      %s219 = smul.addr %s218, 4
      %s220 = scalar_lea.vmem %s0, %s219
      %p221 = pneg %p50
      %p222 = pneg %p47
      %s223 = sadd.s32 %s20, 1
      %s224 = smul.u32 %s223, 3
      %p225 = scmp.lt.s32.totalorder %s19, 1
      %s226 = scalar_select %p225, %s19, 1
      %p227 = scmp.lt.s32.totalorder %s224, 5
      %s228 = scalar_select %p227, %s224, 5
      %s229 = smul.addr %s226, 6
      %s230 = sadd.s32 %s228, %s229
      %s231 = smul.addr %s230, 4
      %s232 = scalar_lea.vmem %s1, %s231
      %p233 = pneg %p82
      %p234 = pneg %p79
      %p235 = pneg %p103
      %p236 = pneg %p100
      %p237 = pneg %p124
      %p238 = pneg %p121
      %p239 = pneg %p152
      %p240 = pneg %p149
      %s241 = smul.u32 3, %s20
      %p242 = scmp.lt.s32.totalorder %s19, 1
      %s243 = scalar_select %p242, %s19, 1
      %p244 = scmp.lt.s32.totalorder %s241, 2
      %s245 = scalar_select %p244, %s241, 2
      %s246 = smul.addr %s243, 3
      %s247 = sadd.s32 %s245, %s246
      %s248 = smul.addr %s247, 8
      %s249 = scalar_lea.vmem %s4, %s248
      %s250 = smul.u32 3, %s20
      %p251 = scmp.lt.s32.totalorder %s19, 1
      %s252 = scalar_select %p251, %s19, 1
      %p253 = scmp.lt.s32.totalorder %s250, 5
      %s254 = scalar_select %p253, %s250, 5
      %s255 = smul.addr %s252, 6
      %s256 = sadd.s32 %s254, %s255
      %s257 = smul.addr %s256, 4
      %s258 = scalar_lea.vmem %s0, %s257
      %s259 = smul.u32 3, %s20
      %s260 = sadd.s32 %s20, 1
      %s261 = smul.u32 %s260, 3
      %p262 = scmp.lt.s32.totalorder %s19, 1
      %s263 = scalar_select %p262, %s19, 1
      %p264 = scmp.lt.s32.totalorder %s261, 5
      %s265 = scalar_select %p264, %s261, 5
      %s266 = smul.addr %s263, 6
      %s267 = sadd.s32 %s265, %s266
      %s268 = smul.addr %s267, 4
      %s269 = scalar_lea.vmem %s1, %s268
      %s270 = sadd.s32 %s20, 1
      %s271 = smul.u32 %s270, 3
      %s272 = smul.u32 3, %s20
      %p273 = scmp.lt.s32.totalorder %s19, 1
      %s274 = scalar_select %p273, %s19, 1
      %p275 = scmp.lt.s32.totalorder %s272, 2
      %s276 = scalar_select %p275, %s272, 2
      %s277 = smul.addr %s274, 3
      %s278 = sadd.s32 %s276, %s277
      %s279 = smul.addr %s278, 8
      %s280 = scalar_lea.vmem %s4, %s279
      %s281 = smul.u32 3, %s20
      %v282 = vld [vmem:[%s258] sm:$0xff]
      %v283 = vld [vmem:[%s258 + $0x8] sm:$0xf]
      %v284 = vld [vmem:[%s269] sm:$0xf]
      %v287 = vcombine.high %v282, %v282
      %v288 = vld [vmem:[%s2] sm:$0xff]
      %s289 = scalar_lea.vmem %s2, 8
      %v290 = vld [vmem:[%s289] sm:$0xff]
      %292 = vrot.lane.b32.xlu0 %v282, 127
      %v293 = vpop.permute.xlu0 %292
      %294 = vrot.lane.b32.xlu0 %v287, 127
      %v295 = vpop.permute.xlu0 %294
      %296 = vrot.lane.b32.xlu0 %v283, 127
      %v297 = vpop.permute.xlu0 %296
      %298 = vrot.lane.b32.xlu0 %v284, 127
      %v299 = vpop.permute.xlu0 %298
      %vm300 = vcmask 1039360
      %v301 = vsel %vm300, %v293, %v295
      %v302 = vsel %vm300, %v295, %v297
      %v303 = vsel %vm300, %v297, %v299
      %vm304 = vcmask 31744
      %v306 = vsel %vm304, %v290, 0
      %vm308 = vcmask 1043456
      %v309 = vsel %vm308, %v301, 0
      %v311 = vsel %vm308, %v302, 0
      %v313 = vsel %vm308, %v303, 0
      %315 = vmatprep.subr.mxu0 0.0
      %316 = vmatpush1.msra.mxu0 0.0
      %317 = vmatprep.subr.mxu0 0.0
      %318 = vmatpush1.msra.mxu0 0.0
      %319 = vmatprep.subr.mxu0 0.0
      %320 = vmatpush1.msra.mxu0 0.0
      %321 = vmatprep.subr.mxu0 0.0
      %322 = vmatpush1.msra.mxu0 0.0
      %323 = vmatprep.subr.mxu0 0.0
      %324 = vmatpush1.msra.mxu0 0.0
      %325 = vmatprep.subr.mxu0 0.0
      %326 = vmatpush1.msra.mxu0 0.0
      %327 = vmatprep.subr.mxu0 0.0
      %328 = vmatpush1.msra.mxu0 0.0
      %329 = vmatprep.subr.mxu0 0.0
      %330 = vmatpush1.msra.mxu0 0.0
      %331 = vmatprep.subr.mxu0 0.0
      %332 = vmatpush1.msra.mxu0 0.0
      %333 = vmatprep.subr.mxu0 0.0
      %334 = vmatpush1.msra.mxu0 0.0
      %335 = vmatprep.subr.mxu0 0.0
      %336 = vmatpush1.msra.mxu0 0.0
      %337 = vmatprep.subr.mxu0 0.0
      %338 = vmatpush1.msra.mxu0 0.0
      %339 = vmatprep.subr.mxu0 0.0
      %340 = vmatpush1.msra.mxu0 0.0
      %341 = vmatprep.subr.mxu0 0.0
      %342 = vmatpush1.msra.mxu0 0.0
      %343 = vmatprep.subr.mxu0 0.0
      %344 = vmatpush1.msra.mxu0 0.0
      %345 = vmatprep.subr.mxu0 %v311
      %346 = vmatpush1.msra.mxu0 %v309
      %347 = vmatprep.subr.mxu0 0.0
      %348 = vmatpush2.msra.mxu0 0.0
      %349 = vmatprep.subr.mxu0 0.0
      %350 = vmatpush2.msra.mxu0 0.0
      %351 = vmatprep.subr.mxu0 0.0
      %352 = vmatpush2.msra.mxu0 0.0
      %353 = vmatprep.subr.mxu0 0.0
      %354 = vmatpush2.msra.mxu0 0.0
      %355 = vmatprep.subr.mxu0 0.0
      %356 = vmatpush2.msra.mxu0 0.0
      %357 = vmatprep.subr.mxu0 0.0
      %358 = vmatpush2.msra.mxu0 0.0
      %359 = vmatprep.subr.mxu0 0.0
      %360 = vmatpush2.msra.mxu0 0.0
      %361 = vmatprep.subr.mxu0 0.0
      %362 = vmatpush2.msra.mxu0 0.0
      %363 = vmatprep.subr.mxu0 0.0
      %364 = vmatpush2.msra.mxu0 0.0
      %365 = vmatprep.subr.mxu0 0.0
      %366 = vmatpush2.msra.mxu0 0.0
      %367 = vmatprep.subr.mxu0 0.0
      %368 = vmatpush2.msra.mxu0 0.0
      %369 = vmatprep.subr.mxu0 0.0
      %370 = vmatpush2.msra.mxu0 0.0
      %371 = vmatprep.subr.mxu0 0.0
      %372 = vmatpush2.msra.mxu0 0.0
      %373 = vmatprep.subr.mxu0 0.0
      %374 = vmatpush2.msra.mxu0 0.0
      %375 = vmatprep.subr.mxu0 0.0
      %376 = vmatpush2.msra.mxu0 0.0
      %377 = vmatprep.subr.mxu0 0.0
      %378 = vmatpush2.msra.mxu0 0.0
      %379 = vmatprep.mubr.f32.mxu0 0.0
      %380 = vmatmul.mubr.f32.gmra.mxu0 %v306
      %v381 = vpop.f32.mrf.mxu0
      %v382 = vadd.f32 0.0, %v381
      %v383 = vpop.f32.mrf.mxu0
      %v384 = vadd.f32 0.0, %v383
      %385 = vdwg.mxu0
      %386 = vmatprep.subr.mxu0 0.0
      %387 = vmatpush1.msra.mxu0 0.0
      %388 = vmatprep.subr.mxu0 0.0
      %389 = vmatpush1.msra.mxu0 0.0
      %390 = vmatprep.subr.mxu0 0.0
      %391 = vmatpush1.msra.mxu0 0.0
      %392 = vmatprep.subr.mxu0 0.0
      %393 = vmatpush1.msra.mxu0 0.0
      %394 = vmatprep.subr.mxu0 0.0
      %395 = vmatpush1.msra.mxu0 0.0
      %396 = vmatprep.subr.mxu0 0.0
      %397 = vmatpush1.msra.mxu0 0.0
      %398 = vmatprep.subr.mxu0 0.0
      %399 = vmatpush1.msra.mxu0 0.0
      %400 = vmatprep.subr.mxu0 0.0
      %401 = vmatpush1.msra.mxu0 0.0
      %402 = vmatprep.subr.mxu0 0.0
      %403 = vmatpush1.msra.mxu0 0.0
      %404 = vmatprep.subr.mxu0 0.0
      %405 = vmatpush1.msra.mxu0 0.0
      %406 = vmatprep.subr.mxu0 0.0
      %407 = vmatpush1.msra.mxu0 0.0
      %408 = vmatprep.subr.mxu0 0.0
      %409 = vmatpush1.msra.mxu0 0.0
      %410 = vmatprep.subr.mxu0 0.0
      %411 = vmatpush1.msra.mxu0 0.0
      %412 = vmatprep.subr.mxu0 0.0
      %413 = vmatpush1.msra.mxu0 0.0
      %414 = vmatprep.subr.mxu0 0.0
      %415 = vmatpush1.msra.mxu0 0.0
      %416 = vmatprep.subr.mxu0 0.0
      %417 = vmatpush1.msra.mxu0 %v313
      %418 = vmatprep.subr.mxu0 0.0
      %419 = vmatpush2.msra.mxu0 0.0
      %420 = vmatprep.subr.mxu0 0.0
      %421 = vmatpush2.msra.mxu0 0.0
      %422 = vmatprep.subr.mxu0 0.0
      %423 = vmatpush2.msra.mxu0 0.0
      %424 = vmatprep.subr.mxu0 0.0
      %425 = vmatpush2.msra.mxu0 0.0
      %426 = vmatprep.subr.mxu0 0.0
      %427 = vmatpush2.msra.mxu0 0.0
      %428 = vmatprep.subr.mxu0 0.0
      %429 = vmatpush2.msra.mxu0 0.0
      %430 = vmatprep.subr.mxu0 0.0
      %431 = vmatpush2.msra.mxu0 0.0
      %432 = vmatprep.subr.mxu0 0.0
      %433 = vmatpush2.msra.mxu0 0.0
      %434 = vmatprep.subr.mxu0 0.0
      %435 = vmatpush2.msra.mxu0 0.0
      %436 = vmatprep.subr.mxu0 0.0
      %437 = vmatpush2.msra.mxu0 0.0
      %438 = vmatprep.subr.mxu0 0.0
      %439 = vmatpush2.msra.mxu0 0.0
      %440 = vmatprep.subr.mxu0 0.0
      %441 = vmatpush2.msra.mxu0 0.0
      %442 = vmatprep.subr.mxu0 0.0
      %443 = vmatpush2.msra.mxu0 0.0
      %444 = vmatprep.subr.mxu0 0.0
      %445 = vmatpush2.msra.mxu0 0.0
      %446 = vmatprep.subr.mxu0 0.0
      %447 = vmatpush2.msra.mxu0 0.0
      %448 = vmatprep.subr.mxu0 0.0
      %449 = vmatpush2.msra.mxu0 0.0
      %450 = vmatprep.mubr.f32.mxu0 0.0
      %451 = vmatmul.mubr.f32.gmra.mxu0 %v306
      %v452 = vpop.f32.mrf.mxu0
      %v453 = vadd.f32 0.0, %v452
      %v454 = vpop.f32.mrf.mxu0
      %455 = vdwg.mxu0
      %v457 = vsel %vm304, %v288, 0
      %v459 = vsel %vm308, %v282, 0
      %v461 = vsel %vm308, %v287, 0
      %v463 = vsel %vm308, %v283, 0
      %465 = vmatprep.subr.mxu0 0.0
      %466 = vmatpush1.msra.mxu0 0.0
      %467 = vmatprep.subr.mxu0 0.0
      %468 = vmatpush1.msra.mxu0 0.0
      %469 = vmatprep.subr.mxu0 0.0
      %470 = vmatpush1.msra.mxu0 0.0
      %471 = vmatprep.subr.mxu0 0.0
      %472 = vmatpush1.msra.mxu0 0.0
      %473 = vmatprep.subr.mxu0 0.0
      %474 = vmatpush1.msra.mxu0 0.0
      %475 = vmatprep.subr.mxu0 0.0
      %476 = vmatpush1.msra.mxu0 0.0
      %477 = vmatprep.subr.mxu0 0.0
      %478 = vmatpush1.msra.mxu0 0.0
      %479 = vmatprep.subr.mxu0 0.0
      %480 = vmatpush1.msra.mxu0 0.0
      %481 = vmatprep.subr.mxu0 0.0
      %482 = vmatpush1.msra.mxu0 0.0
      %483 = vmatprep.subr.mxu0 0.0
      %484 = vmatpush1.msra.mxu0 0.0
      %485 = vmatprep.subr.mxu0 0.0
      %486 = vmatpush1.msra.mxu0 0.0
      %487 = vmatprep.subr.mxu0 0.0
      %488 = vmatpush1.msra.mxu0 0.0
      %489 = vmatprep.subr.mxu0 0.0
      %490 = vmatpush1.msra.mxu0 0.0
      %491 = vmatprep.subr.mxu0 0.0
      %492 = vmatpush1.msra.mxu0 0.0
      %493 = vmatprep.subr.mxu0 0.0
      %494 = vmatpush1.msra.mxu0 0.0
      %495 = vmatprep.subr.mxu0 %v461
      %496 = vmatpush1.msra.mxu0 %v459
      %497 = vmatprep.subr.mxu0 0.0
      %498 = vmatpush2.msra.mxu0 0.0
      %499 = vmatprep.subr.mxu0 0.0
      %500 = vmatpush2.msra.mxu0 0.0
      %501 = vmatprep.subr.mxu0 0.0
      %502 = vmatpush2.msra.mxu0 0.0
      %503 = vmatprep.subr.mxu0 0.0
      %504 = vmatpush2.msra.mxu0 0.0
      %505 = vmatprep.subr.mxu0 0.0
      %506 = vmatpush2.msra.mxu0 0.0
      %507 = vmatprep.subr.mxu0 0.0
      %508 = vmatpush2.msra.mxu0 0.0
      %509 = vmatprep.subr.mxu0 0.0
      %510 = vmatpush2.msra.mxu0 0.0
      %511 = vmatprep.subr.mxu0 0.0
      %512 = vmatpush2.msra.mxu0 0.0
      %513 = vmatprep.subr.mxu0 0.0
      %514 = vmatpush2.msra.mxu0 0.0
      %515 = vmatprep.subr.mxu0 0.0
      %516 = vmatpush2.msra.mxu0 0.0
      %517 = vmatprep.subr.mxu0 0.0
      %518 = vmatpush2.msra.mxu0 0.0
      %519 = vmatprep.subr.mxu0 0.0
      %520 = vmatpush2.msra.mxu0 0.0
      %521 = vmatprep.subr.mxu0 0.0
      %522 = vmatpush2.msra.mxu0 0.0
      %523 = vmatprep.subr.mxu0 0.0
      %524 = vmatpush2.msra.mxu0 0.0
      %525 = vmatprep.subr.mxu0 0.0
      %526 = vmatpush2.msra.mxu0 0.0
      %527 = vmatprep.subr.mxu0 0.0
      %528 = vmatpush2.msra.mxu0 0.0
      %529 = vmatprep.mubr.f32.mxu0 0.0
      %530 = vmatmul.mubr.f32.gmra.mxu0 %v457
      %v531 = vpop.f32.mrf.mxu0
      %v532 = vadd.f32 %v382, %v531
      %v533 = vpop.f32.mrf.mxu0
      %v534 = vadd.f32 %v384, %v533
      %535 = vdwg.mxu0
      %536 = vmatprep.subr.mxu0 0.0
      %537 = vmatpush1.msra.mxu0 0.0
      %538 = vmatprep.subr.mxu0 0.0
      %539 = vmatpush1.msra.mxu0 0.0
      %540 = vmatprep.subr.mxu0 0.0
      %541 = vmatpush1.msra.mxu0 0.0
      %542 = vmatprep.subr.mxu0 0.0
      %543 = vmatpush1.msra.mxu0 0.0
      %544 = vmatprep.subr.mxu0 0.0
      %545 = vmatpush1.msra.mxu0 0.0
      %546 = vmatprep.subr.mxu0 0.0
      %547 = vmatpush1.msra.mxu0 0.0
      %548 = vmatprep.subr.mxu0 0.0
      %549 = vmatpush1.msra.mxu0 0.0
      %550 = vmatprep.subr.mxu0 0.0
      %551 = vmatpush1.msra.mxu0 0.0
      %552 = vmatprep.subr.mxu0 0.0
      %553 = vmatpush1.msra.mxu0 0.0
      %554 = vmatprep.subr.mxu0 0.0
      %555 = vmatpush1.msra.mxu0 0.0
      %556 = vmatprep.subr.mxu0 0.0
      %557 = vmatpush1.msra.mxu0 0.0
      %558 = vmatprep.subr.mxu0 0.0
      %559 = vmatpush1.msra.mxu0 0.0
      %560 = vmatprep.subr.mxu0 0.0
      %561 = vmatpush1.msra.mxu0 0.0
      %562 = vmatprep.subr.mxu0 0.0
      %563 = vmatpush1.msra.mxu0 0.0
      %564 = vmatprep.subr.mxu0 0.0
      %565 = vmatpush1.msra.mxu0 0.0
      %566 = vmatprep.subr.mxu0 0.0
      %567 = vmatpush1.msra.mxu0 %v463
      %568 = vmatprep.subr.mxu0 0.0
      %569 = vmatpush2.msra.mxu0 0.0
      %570 = vmatprep.subr.mxu0 0.0
      %571 = vmatpush2.msra.mxu0 0.0
      %572 = vmatprep.subr.mxu0 0.0
      %573 = vmatpush2.msra.mxu0 0.0
      %574 = vmatprep.subr.mxu0 0.0
      %575 = vmatpush2.msra.mxu0 0.0
      %576 = vmatprep.subr.mxu0 0.0
      %577 = vmatpush2.msra.mxu0 0.0
      %578 = vmatprep.subr.mxu0 0.0
      %579 = vmatpush2.msra.mxu0 0.0
      %580 = vmatprep.subr.mxu0 0.0
      %581 = vmatpush2.msra.mxu0 0.0
      %582 = vmatprep.subr.mxu0 0.0
      %583 = vmatpush2.msra.mxu0 0.0
      %584 = vmatprep.subr.mxu0 0.0
      %585 = vmatpush2.msra.mxu0 0.0
      %586 = vmatprep.subr.mxu0 0.0
      %587 = vmatpush2.msra.mxu0 0.0
      %588 = vmatprep.subr.mxu0 0.0
      %589 = vmatpush2.msra.mxu0 0.0
      %590 = vmatprep.subr.mxu0 0.0
      %591 = vmatpush2.msra.mxu0 0.0
      %592 = vmatprep.subr.mxu0 0.0
      %593 = vmatpush2.msra.mxu0 0.0
      %594 = vmatprep.subr.mxu0 0.0
      %595 = vmatpush2.msra.mxu0 0.0
      %596 = vmatprep.subr.mxu0 0.0
      %597 = vmatpush2.msra.mxu0 0.0
      %598 = vmatprep.subr.mxu0 0.0
      %599 = vmatpush2.msra.mxu0 0.0
      %600 = vmatprep.mubr.f32.mxu0 0.0
      %601 = vmatmul.mubr.f32.gmra.mxu0 %v457
      %v602 = vpop.f32.mrf.mxu0
      %v603 = vadd.f32 %v453, %v602
      %v604 = vpop.f32.mrf.mxu0
      %605 = vdwg.mxu0
      %s606 = scalar_lea.vmem %s2, 16
      %v607 = vld [vmem:[%s606] sm:$0xff]
      %608 = vrot.lane.b32.xlu0 %v282, 126
      %v609 = vpop.permute.xlu0 %608
      %610 = vrot.lane.b32.xlu0 %v287, 126
      %v611 = vpop.permute.xlu0 %610
      %612 = vrot.lane.b32.xlu0 %v283, 126
      %v613 = vpop.permute.xlu0 %612
      %614 = vrot.lane.b32.xlu0 %v284, 126
      %v615 = vpop.permute.xlu0 %614
      %vm616 = vcmask 1031168
      %v617 = vsel %vm616, %v609, %v611
      %v618 = vsel %vm616, %v611, %v613
      %v619 = vsel %vm616, %v613, %v615
      %v621 = vsel %vm304, %v607, 0
      %v623 = vsel %vm308, %v617, 0
      %v625 = vsel %vm308, %v618, 0
      %v627 = vsel %vm308, %v619, 0
      %629 = vmatprep.subr.mxu0 0.0
      %630 = vmatpush1.msra.mxu0 0.0
      %631 = vmatprep.subr.mxu0 0.0
      %632 = vmatpush1.msra.mxu0 0.0
      %633 = vmatprep.subr.mxu0 0.0
      %634 = vmatpush1.msra.mxu0 0.0
      %635 = vmatprep.subr.mxu0 0.0
      %636 = vmatpush1.msra.mxu0 0.0
      %637 = vmatprep.subr.mxu0 0.0
      %638 = vmatpush1.msra.mxu0 0.0
      %639 = vmatprep.subr.mxu0 0.0
      %640 = vmatpush1.msra.mxu0 0.0
      %641 = vmatprep.subr.mxu0 0.0
      %642 = vmatpush1.msra.mxu0 0.0
      %643 = vmatprep.subr.mxu0 0.0
      %644 = vmatpush1.msra.mxu0 0.0
      %645 = vmatprep.subr.mxu0 0.0
      %646 = vmatpush1.msra.mxu0 0.0
      %647 = vmatprep.subr.mxu0 0.0
      %648 = vmatpush1.msra.mxu0 0.0
      %649 = vmatprep.subr.mxu0 0.0
      %650 = vmatpush1.msra.mxu0 0.0
      %651 = vmatprep.subr.mxu0 0.0
      %652 = vmatpush1.msra.mxu0 0.0
      %653 = vmatprep.subr.mxu0 0.0
      %654 = vmatpush1.msra.mxu0 0.0
      %655 = vmatprep.subr.mxu0 0.0
      %656 = vmatpush1.msra.mxu0 0.0
      %657 = vmatprep.subr.mxu0 0.0
      %658 = vmatpush1.msra.mxu0 0.0
      %659 = vmatprep.subr.mxu0 %v625
      %660 = vmatpush1.msra.mxu0 %v623
      %661 = vmatprep.subr.mxu0 0.0
      %662 = vmatpush2.msra.mxu0 0.0
      %663 = vmatprep.subr.mxu0 0.0
      %664 = vmatpush2.msra.mxu0 0.0
      %665 = vmatprep.subr.mxu0 0.0
      %666 = vmatpush2.msra.mxu0 0.0
      %667 = vmatprep.subr.mxu0 0.0
      %668 = vmatpush2.msra.mxu0 0.0
      %669 = vmatprep.subr.mxu0 0.0
      %670 = vmatpush2.msra.mxu0 0.0
      %671 = vmatprep.subr.mxu0 0.0
      %672 = vmatpush2.msra.mxu0 0.0
      %673 = vmatprep.subr.mxu0 0.0
      %674 = vmatpush2.msra.mxu0 0.0
      %675 = vmatprep.subr.mxu0 0.0
      %676 = vmatpush2.msra.mxu0 0.0
      %677 = vmatprep.subr.mxu0 0.0
      %678 = vmatpush2.msra.mxu0 0.0
      %679 = vmatprep.subr.mxu0 0.0
      %680 = vmatpush2.msra.mxu0 0.0
      %681 = vmatprep.subr.mxu0 0.0
      %682 = vmatpush2.msra.mxu0 0.0
      %683 = vmatprep.subr.mxu0 0.0
      %684 = vmatpush2.msra.mxu0 0.0
      %685 = vmatprep.subr.mxu0 0.0
      %686 = vmatpush2.msra.mxu0 0.0
      %687 = vmatprep.subr.mxu0 0.0
      %688 = vmatpush2.msra.mxu0 0.0
      %689 = vmatprep.subr.mxu0 0.0
      %690 = vmatpush2.msra.mxu0 0.0
      %691 = vmatprep.subr.mxu0 0.0
      %692 = vmatpush2.msra.mxu0 0.0
      %693 = vmatprep.mubr.f32.mxu0 0.0
      %694 = vmatmul.mubr.f32.gmra.mxu0 %v621
      %v695 = vpop.f32.mrf.mxu0
      %v696 = vadd.f32 0.0, %v695
      %v697 = vpop.f32.mrf.mxu0
      %v698 = vadd.f32 0.0, %v697
      %699 = vdwg.mxu0
      %700 = vmatprep.subr.mxu0 0.0
      %701 = vmatpush1.msra.mxu0 0.0
      %702 = vmatprep.subr.mxu0 0.0
      %703 = vmatpush1.msra.mxu0 0.0
      %704 = vmatprep.subr.mxu0 0.0
      %705 = vmatpush1.msra.mxu0 0.0
      %706 = vmatprep.subr.mxu0 0.0
      %707 = vmatpush1.msra.mxu0 0.0
      %708 = vmatprep.subr.mxu0 0.0
      %709 = vmatpush1.msra.mxu0 0.0
      %710 = vmatprep.subr.mxu0 0.0
      %711 = vmatpush1.msra.mxu0 0.0
      %712 = vmatprep.subr.mxu0 0.0
      %713 = vmatpush1.msra.mxu0 0.0
      %714 = vmatprep.subr.mxu0 0.0
      %715 = vmatpush1.msra.mxu0 0.0
      %716 = vmatprep.subr.mxu0 0.0
      %717 = vmatpush1.msra.mxu0 0.0
      %718 = vmatprep.subr.mxu0 0.0
      %719 = vmatpush1.msra.mxu0 0.0
      %720 = vmatprep.subr.mxu0 0.0
      %721 = vmatpush1.msra.mxu0 0.0
      %722 = vmatprep.subr.mxu0 0.0
      %723 = vmatpush1.msra.mxu0 0.0
      %724 = vmatprep.subr.mxu0 0.0
      %725 = vmatpush1.msra.mxu0 0.0
      %726 = vmatprep.subr.mxu0 0.0
      %727 = vmatpush1.msra.mxu0 0.0
      %728 = vmatprep.subr.mxu0 0.0
      %729 = vmatpush1.msra.mxu0 0.0
      %730 = vmatprep.subr.mxu0 0.0
      %731 = vmatpush1.msra.mxu0 %v627
      %732 = vmatprep.subr.mxu0 0.0
      %733 = vmatpush2.msra.mxu0 0.0
      %734 = vmatprep.subr.mxu0 0.0
      %735 = vmatpush2.msra.mxu0 0.0
      %736 = vmatprep.subr.mxu0 0.0
      %737 = vmatpush2.msra.mxu0 0.0
      %738 = vmatprep.subr.mxu0 0.0
      %739 = vmatpush2.msra.mxu0 0.0
      %740 = vmatprep.subr.mxu0 0.0
      %741 = vmatpush2.msra.mxu0 0.0
      %742 = vmatprep.subr.mxu0 0.0
      %743 = vmatpush2.msra.mxu0 0.0
      %744 = vmatprep.subr.mxu0 0.0
      %745 = vmatpush2.msra.mxu0 0.0
      %746 = vmatprep.subr.mxu0 0.0
      %747 = vmatpush2.msra.mxu0 0.0
      %748 = vmatprep.subr.mxu0 0.0
      %749 = vmatpush2.msra.mxu0 0.0
      %750 = vmatprep.subr.mxu0 0.0
      %751 = vmatpush2.msra.mxu0 0.0
      %752 = vmatprep.subr.mxu0 0.0
      %753 = vmatpush2.msra.mxu0 0.0
      %754 = vmatprep.subr.mxu0 0.0
      %755 = vmatpush2.msra.mxu0 0.0
      %756 = vmatprep.subr.mxu0 0.0
      %757 = vmatpush2.msra.mxu0 0.0
      %758 = vmatprep.subr.mxu0 0.0
      %759 = vmatpush2.msra.mxu0 0.0
      %760 = vmatprep.subr.mxu0 0.0
      %761 = vmatpush2.msra.mxu0 0.0
      %762 = vmatprep.subr.mxu0 0.0
      %763 = vmatpush2.msra.mxu0 0.0
      %764 = vmatprep.mubr.f32.mxu0 0.0
      %765 = vmatmul.mubr.f32.gmra.mxu0 %v621
      %v766 = vpop.f32.mrf.mxu0
      %v767 = vadd.f32 0.0, %v766
      %v768 = vpop.f32.mrf.mxu0
      %769 = vdwg.mxu0
      %v770 = vadd.f32 %v532, %v696
      %v771 = vadd.f32 %v534, %v698
      %v772 = vadd.f32 %v603, %v767
      %s773 = scalar_lea.vmem %s2, 24
      %v774 = vld [vmem:[%s773] sm:$0xff]
      %775 = vrot.lane.b32.xlu0 %v282, 110
      %v776 = vpop.permute.xlu0 %775
      %777 = vrot.lane.b32.xlu0 %v287, 110
      %v778 = vpop.permute.xlu0 %777
      %779 = vrot.lane.b32.xlu0 %v283, 110
      %v780 = vpop.permute.xlu0 %779
      %781 = vrot.lane.b32.xlu0 %v284, 110
      %v782 = vpop.permute.xlu0 %781
      %vm783 = vcmask 900096
      %v784 = vsel %vm783, %v776, %v778
      %v785 = vsel %vm783, %v778, %v780
      %v786 = vsel %vm783, %v780, %v782
      %v788 = vsel %vm304, %v774, 0
      %v790 = vsel %vm308, %v784, 0
      %v792 = vsel %vm308, %v785, 0
      %v794 = vsel %vm308, %v786, 0
      %796 = vmatprep.subr.mxu0 0.0
      %797 = vmatpush1.msra.mxu0 0.0
      %798 = vmatprep.subr.mxu0 0.0
      %799 = vmatpush1.msra.mxu0 0.0
      %800 = vmatprep.subr.mxu0 0.0
      %801 = vmatpush1.msra.mxu0 0.0
      %802 = vmatprep.subr.mxu0 0.0
      %803 = vmatpush1.msra.mxu0 0.0
      %804 = vmatprep.subr.mxu0 0.0
      %805 = vmatpush1.msra.mxu0 0.0
      %806 = vmatprep.subr.mxu0 0.0
      %807 = vmatpush1.msra.mxu0 0.0
      %808 = vmatprep.subr.mxu0 0.0
      %809 = vmatpush1.msra.mxu0 0.0
      %810 = vmatprep.subr.mxu0 0.0
      %811 = vmatpush1.msra.mxu0 0.0
      %812 = vmatprep.subr.mxu0 0.0
      %813 = vmatpush1.msra.mxu0 0.0
      %814 = vmatprep.subr.mxu0 0.0
      %815 = vmatpush1.msra.mxu0 0.0
      %816 = vmatprep.subr.mxu0 0.0
      %817 = vmatpush1.msra.mxu0 0.0
      %818 = vmatprep.subr.mxu0 0.0
      %819 = vmatpush1.msra.mxu0 0.0
      %820 = vmatprep.subr.mxu0 0.0
      %821 = vmatpush1.msra.mxu0 0.0
      %822 = vmatprep.subr.mxu0 0.0
      %823 = vmatpush1.msra.mxu0 0.0
      %824 = vmatprep.subr.mxu0 0.0
      %825 = vmatpush1.msra.mxu0 0.0
      %826 = vmatprep.subr.mxu0 %v792
      %827 = vmatpush1.msra.mxu0 %v790
      %828 = vmatprep.subr.mxu0 0.0
      %829 = vmatpush2.msra.mxu0 0.0
      %830 = vmatprep.subr.mxu0 0.0
      %831 = vmatpush2.msra.mxu0 0.0
      %832 = vmatprep.subr.mxu0 0.0
      %833 = vmatpush2.msra.mxu0 0.0
      %834 = vmatprep.subr.mxu0 0.0
      %835 = vmatpush2.msra.mxu0 0.0
      %836 = vmatprep.subr.mxu0 0.0
      %837 = vmatpush2.msra.mxu0 0.0
      %838 = vmatprep.subr.mxu0 0.0
      %839 = vmatpush2.msra.mxu0 0.0
      %840 = vmatprep.subr.mxu0 0.0
      %841 = vmatpush2.msra.mxu0 0.0
      %842 = vmatprep.subr.mxu0 0.0
      %843 = vmatpush2.msra.mxu0 0.0
      %844 = vmatprep.subr.mxu0 0.0
      %845 = vmatpush2.msra.mxu0 0.0
      %846 = vmatprep.subr.mxu0 0.0
      %847 = vmatpush2.msra.mxu0 0.0
      %848 = vmatprep.subr.mxu0 0.0
      %849 = vmatpush2.msra.mxu0 0.0
      %850 = vmatprep.subr.mxu0 0.0
      %851 = vmatpush2.msra.mxu0 0.0
      %852 = vmatprep.subr.mxu0 0.0
      %853 = vmatpush2.msra.mxu0 0.0
      %854 = vmatprep.subr.mxu0 0.0
      %855 = vmatpush2.msra.mxu0 0.0
      %856 = vmatprep.subr.mxu0 0.0
      %857 = vmatpush2.msra.mxu0 0.0
      %858 = vmatprep.subr.mxu0 0.0
      %859 = vmatpush2.msra.mxu0 0.0
      %860 = vmatprep.mubr.f32.mxu0 0.0
      %861 = vmatmul.mubr.f32.gmra.mxu0 %v788
      %v862 = vpop.f32.mrf.mxu0
      %v863 = vadd.f32 0.0, %v862
      %v864 = vpop.f32.mrf.mxu0
      %v865 = vadd.f32 0.0, %v864
      %866 = vdwg.mxu0
      %867 = vmatprep.subr.mxu0 0.0
      %868 = vmatpush1.msra.mxu0 0.0
      %869 = vmatprep.subr.mxu0 0.0
      %870 = vmatpush1.msra.mxu0 0.0
      %871 = vmatprep.subr.mxu0 0.0
      %872 = vmatpush1.msra.mxu0 0.0
      %873 = vmatprep.subr.mxu0 0.0
      %874 = vmatpush1.msra.mxu0 0.0
      %875 = vmatprep.subr.mxu0 0.0
      %876 = vmatpush1.msra.mxu0 0.0
      %877 = vmatprep.subr.mxu0 0.0
      %878 = vmatpush1.msra.mxu0 0.0
      %879 = vmatprep.subr.mxu0 0.0
      %880 = vmatpush1.msra.mxu0 0.0
      %881 = vmatprep.subr.mxu0 0.0
      %882 = vmatpush1.msra.mxu0 0.0
      %883 = vmatprep.subr.mxu0 0.0
      %884 = vmatpush1.msra.mxu0 0.0
      %885 = vmatprep.subr.mxu0 0.0
      %886 = vmatpush1.msra.mxu0 0.0
      %887 = vmatprep.subr.mxu0 0.0
      %888 = vmatpush1.msra.mxu0 0.0
      %889 = vmatprep.subr.mxu0 0.0
      %890 = vmatpush1.msra.mxu0 0.0
      %891 = vmatprep.subr.mxu0 0.0
      %892 = vmatpush1.msra.mxu0 0.0
      %893 = vmatprep.subr.mxu0 0.0
      %894 = vmatpush1.msra.mxu0 0.0
      %895 = vmatprep.subr.mxu0 0.0
      %896 = vmatpush1.msra.mxu0 0.0
      %897 = vmatprep.subr.mxu0 0.0
      %898 = vmatpush1.msra.mxu0 %v794
      %899 = vmatprep.subr.mxu0 0.0
      %900 = vmatpush2.msra.mxu0 0.0
      %901 = vmatprep.subr.mxu0 0.0
      %902 = vmatpush2.msra.mxu0 0.0
      %903 = vmatprep.subr.mxu0 0.0
      %904 = vmatpush2.msra.mxu0 0.0
      %905 = vmatprep.subr.mxu0 0.0
      %906 = vmatpush2.msra.mxu0 0.0
      %907 = vmatprep.subr.mxu0 0.0
      %908 = vmatpush2.msra.mxu0 0.0
      %909 = vmatprep.subr.mxu0 0.0
      %910 = vmatpush2.msra.mxu0 0.0
      %911 = vmatprep.subr.mxu0 0.0
      %912 = vmatpush2.msra.mxu0 0.0
      %913 = vmatprep.subr.mxu0 0.0
      %914 = vmatpush2.msra.mxu0 0.0
      %915 = vmatprep.subr.mxu0 0.0
      %916 = vmatpush2.msra.mxu0 0.0
      %917 = vmatprep.subr.mxu0 0.0
      %918 = vmatpush2.msra.mxu0 0.0
      %919 = vmatprep.subr.mxu0 0.0
      %920 = vmatpush2.msra.mxu0 0.0
      %921 = vmatprep.subr.mxu0 0.0
      %922 = vmatpush2.msra.mxu0 0.0
      %923 = vmatprep.subr.mxu0 0.0
      %924 = vmatpush2.msra.mxu0 0.0
      %925 = vmatprep.subr.mxu0 0.0
      %926 = vmatpush2.msra.mxu0 0.0
      %927 = vmatprep.subr.mxu0 0.0
      %928 = vmatpush2.msra.mxu0 0.0
      %929 = vmatprep.subr.mxu0 0.0
      %930 = vmatpush2.msra.mxu0 0.0
      %931 = vmatprep.mubr.f32.mxu0 0.0
      %932 = vmatmul.mubr.f32.gmra.mxu0 %v788
      %v933 = vpop.f32.mrf.mxu0
      %v934 = vadd.f32 0.0, %v933
      %v935 = vpop.f32.mrf.mxu0
      %936 = vdwg.mxu0
      %v937 = vadd.f32 %v770, %v863
      %v938 = vadd.f32 %v771, %v865
      %v939 = vadd.f32 %v772, %v934
      %s940 = scalar_lea.vmem %s2, 32
      %v941 = vld [vmem:[%s940] sm:$0xff]
      %942 = vrot.lane.b32.xlu0 %v282, 109
      %v943 = vpop.permute.xlu0 %942
      %944 = vrot.lane.b32.xlu0 %v287, 109
      %v945 = vpop.permute.xlu0 %944
      %946 = vrot.lane.b32.xlu0 %v283, 109
      %v947 = vpop.permute.xlu0 %946
      %948 = vrot.lane.b32.xlu0 %v284, 109
      %v949 = vpop.permute.xlu0 %948
      %vm950 = vcmask 891904
      %v951 = vsel %vm950, %v943, %v945
      %v952 = vsel %vm950, %v945, %v947
      %v953 = vsel %vm950, %v947, %v949
      %v955 = vsel %vm304, %v941, 0
      %v957 = vsel %vm308, %v951, 0
      %v959 = vsel %vm308, %v952, 0
      %v961 = vsel %vm308, %v953, 0
      %963 = vmatprep.subr.mxu0 0.0
      %964 = vmatpush1.msra.mxu0 0.0
      %965 = vmatprep.subr.mxu0 0.0
      %966 = vmatpush1.msra.mxu0 0.0
      %967 = vmatprep.subr.mxu0 0.0
      %968 = vmatpush1.msra.mxu0 0.0
      %969 = vmatprep.subr.mxu0 0.0
      %970 = vmatpush1.msra.mxu0 0.0
      %971 = vmatprep.subr.mxu0 0.0
      %972 = vmatpush1.msra.mxu0 0.0
      %973 = vmatprep.subr.mxu0 0.0
      %974 = vmatpush1.msra.mxu0 0.0
      %975 = vmatprep.subr.mxu0 0.0
      %976 = vmatpush1.msra.mxu0 0.0
      %977 = vmatprep.subr.mxu0 0.0
      %978 = vmatpush1.msra.mxu0 0.0
      %979 = vmatprep.subr.mxu0 0.0
      %980 = vmatpush1.msra.mxu0 0.0
      %981 = vmatprep.subr.mxu0 0.0
      %982 = vmatpush1.msra.mxu0 0.0
      %983 = vmatprep.subr.mxu0 0.0
      %984 = vmatpush1.msra.mxu0 0.0
      %985 = vmatprep.subr.mxu0 0.0
      %986 = vmatpush1.msra.mxu0 0.0
      %987 = vmatprep.subr.mxu0 0.0
      %988 = vmatpush1.msra.mxu0 0.0
      %989 = vmatprep.subr.mxu0 0.0
      %990 = vmatpush1.msra.mxu0 0.0
      %991 = vmatprep.subr.mxu0 0.0
      %992 = vmatpush1.msra.mxu0 0.0
      %993 = vmatprep.subr.mxu0 %v959
      %994 = vmatpush1.msra.mxu0 %v957
      %995 = vmatprep.subr.mxu0 0.0
      %996 = vmatpush2.msra.mxu0 0.0
      %997 = vmatprep.subr.mxu0 0.0
      %998 = vmatpush2.msra.mxu0 0.0
      %999 = vmatprep.subr.mxu0 0.0
      %1000 = vmatpush2.msra.mxu0 0.0
      %1001 = vmatprep.subr.mxu0 0.0
      %1002 = vmatpush2.msra.mxu0 0.0
      %1003 = vmatprep.subr.mxu0 0.0
      %1004 = vmatpush2.msra.mxu0 0.0
      %1005 = vmatprep.subr.mxu0 0.0
      %1006 = vmatpush2.msra.mxu0 0.0
      %1007 = vmatprep.subr.mxu0 0.0
      %1008 = vmatpush2.msra.mxu0 0.0
      %1009 = vmatprep.subr.mxu0 0.0
      %1010 = vmatpush2.msra.mxu0 0.0
      %1011 = vmatprep.subr.mxu0 0.0
      %1012 = vmatpush2.msra.mxu0 0.0
      %1013 = vmatprep.subr.mxu0 0.0
      %1014 = vmatpush2.msra.mxu0 0.0
      %1015 = vmatprep.subr.mxu0 0.0
      %1016 = vmatpush2.msra.mxu0 0.0
      %1017 = vmatprep.subr.mxu0 0.0
      %1018 = vmatpush2.msra.mxu0 0.0
      %1019 = vmatprep.subr.mxu0 0.0
      %1020 = vmatpush2.msra.mxu0 0.0
      %1021 = vmatprep.subr.mxu0 0.0
      %1022 = vmatpush2.msra.mxu0 0.0
      %1023 = vmatprep.subr.mxu0 0.0
      %1024 = vmatpush2.msra.mxu0 0.0
      %1025 = vmatprep.subr.mxu0 0.0
      %1026 = vmatpush2.msra.mxu0 0.0
      %1027 = vmatprep.mubr.f32.mxu0 0.0
      %1028 = vmatmul.mubr.f32.gmra.mxu0 %v955
      %v1029 = vpop.f32.mrf.mxu0
      %v1030 = vadd.f32 0.0, %v1029
      %v1031 = vpop.f32.mrf.mxu0
      %v1032 = vadd.f32 0.0, %v1031
      %1033 = vdwg.mxu0
      %1034 = vmatprep.subr.mxu0 0.0
      %1035 = vmatpush1.msra.mxu0 0.0
      %1036 = vmatprep.subr.mxu0 0.0
      %1037 = vmatpush1.msra.mxu0 0.0
      %1038 = vmatprep.subr.mxu0 0.0
      %1039 = vmatpush1.msra.mxu0 0.0
      %1040 = vmatprep.subr.mxu0 0.0
      %1041 = vmatpush1.msra.mxu0 0.0
      %1042 = vmatprep.subr.mxu0 0.0
      %1043 = vmatpush1.msra.mxu0 0.0
      %1044 = vmatprep.subr.mxu0 0.0
      %1045 = vmatpush1.msra.mxu0 0.0
      %1046 = vmatprep.subr.mxu0 0.0
      %1047 = vmatpush1.msra.mxu0 0.0
      %1048 = vmatprep.subr.mxu0 0.0
      %1049 = vmatpush1.msra.mxu0 0.0
      %1050 = vmatprep.subr.mxu0 0.0
      %1051 = vmatpush1.msra.mxu0 0.0
      %1052 = vmatprep.subr.mxu0 0.0
      %1053 = vmatpush1.msra.mxu0 0.0
      %1054 = vmatprep.subr.mxu0 0.0
      %1055 = vmatpush1.msra.mxu0 0.0
      %1056 = vmatprep.subr.mxu0 0.0
      %1057 = vmatpush1.msra.mxu0 0.0
      %1058 = vmatprep.subr.mxu0 0.0
      %1059 = vmatpush1.msra.mxu0 0.0
      %1060 = vmatprep.subr.mxu0 0.0
      %1061 = vmatpush1.msra.mxu0 0.0
      %1062 = vmatprep.subr.mxu0 0.0
      %1063 = vmatpush1.msra.mxu0 0.0
      %1064 = vmatprep.subr.mxu0 0.0
      %1065 = vmatpush1.msra.mxu0 %v961
      %1066 = vmatprep.subr.mxu0 0.0
      %1067 = vmatpush2.msra.mxu0 0.0
      %1068 = vmatprep.subr.mxu0 0.0
      %1069 = vmatpush2.msra.mxu0 0.0
      %1070 = vmatprep.subr.mxu0 0.0
      %1071 = vmatpush2.msra.mxu0 0.0
      %1072 = vmatprep.subr.mxu0 0.0
      %1073 = vmatpush2.msra.mxu0 0.0
      %1074 = vmatprep.subr.mxu0 0.0
      %1075 = vmatpush2.msra.mxu0 0.0
      %1076 = vmatprep.subr.mxu0 0.0
      %1077 = vmatpush2.msra.mxu0 0.0
      %1078 = vmatprep.subr.mxu0 0.0
      %1079 = vmatpush2.msra.mxu0 0.0
      %1080 = vmatprep.subr.mxu0 0.0
      %1081 = vmatpush2.msra.mxu0 0.0
      %1082 = vmatprep.subr.mxu0 0.0
      %1083 = vmatpush2.msra.mxu0 0.0
      %1084 = vmatprep.subr.mxu0 0.0
      %1085 = vmatpush2.msra.mxu0 0.0
      %1086 = vmatprep.subr.mxu0 0.0
      %1087 = vmatpush2.msra.mxu0 0.0
      %1088 = vmatprep.subr.mxu0 0.0
      %1089 = vmatpush2.msra.mxu0 0.0
      %1090 = vmatprep.subr.mxu0 0.0
      %1091 = vmatpush2.msra.mxu0 0.0
      %1092 = vmatprep.subr.mxu0 0.0
      %1093 = vmatpush2.msra.mxu0 0.0
      %1094 = vmatprep.subr.mxu0 0.0
      %1095 = vmatpush2.msra.mxu0 0.0
      %1096 = vmatprep.subr.mxu0 0.0
      %1097 = vmatpush2.msra.mxu0 0.0
      %1098 = vmatprep.mubr.f32.mxu0 0.0
      %1099 = vmatmul.mubr.f32.gmra.mxu0 %v955
      %v1100 = vpop.f32.mrf.mxu0
      %v1101 = vadd.f32 0.0, %v1100
      %v1102 = vpop.f32.mrf.mxu0
      %1103 = vdwg.mxu0
      %v1104 = vadd.f32 %v937, %v1030
      %v1105 = vadd.f32 %v938, %v1032
      %v1106 = vadd.f32 %v939, %v1101
      %s1107 = scalar_lea.vmem %s2, 40
      %v1108 = vld [vmem:[%s1107] sm:$0xff]
      %1109 = vrot.lane.b32.xlu0 %v282, 108
      %v1110 = vpop.permute.xlu0 %1109
      %1111 = vrot.lane.b32.xlu0 %v287, 108
      %v1112 = vpop.permute.xlu0 %1111
      %1113 = vrot.lane.b32.xlu0 %v283, 108
      %v1114 = vpop.permute.xlu0 %1113
      %1115 = vrot.lane.b32.xlu0 %v284, 108
      %v1116 = vpop.permute.xlu0 %1115
      %vm1117 = vcmask 883712
      %v1118 = vsel %vm1117, %v1110, %v1112
      %v1119 = vsel %vm1117, %v1112, %v1114
      %v1120 = vsel %vm1117, %v1114, %v1116
      %v1122 = vsel %vm304, %v1108, 0
      %v1124 = vsel %vm308, %v1118, 0
      %v1126 = vsel %vm308, %v1119, 0
      %v1128 = vsel %vm308, %v1120, 0
      %1130 = vmatprep.subr.mxu0 0.0
      %1131 = vmatpush1.msra.mxu0 0.0
      %1132 = vmatprep.subr.mxu0 0.0
      %1133 = vmatpush1.msra.mxu0 0.0
      %1134 = vmatprep.subr.mxu0 0.0
      %1135 = vmatpush1.msra.mxu0 0.0
      %1136 = vmatprep.subr.mxu0 0.0
      %1137 = vmatpush1.msra.mxu0 0.0
      %1138 = vmatprep.subr.mxu0 0.0
      %1139 = vmatpush1.msra.mxu0 0.0
      %1140 = vmatprep.subr.mxu0 0.0
      %1141 = vmatpush1.msra.mxu0 0.0
      %1142 = vmatprep.subr.mxu0 0.0
      %1143 = vmatpush1.msra.mxu0 0.0
      %1144 = vmatprep.subr.mxu0 0.0
      %1145 = vmatpush1.msra.mxu0 0.0
      %1146 = vmatprep.subr.mxu0 0.0
      %1147 = vmatpush1.msra.mxu0 0.0
      %1148 = vmatprep.subr.mxu0 0.0
      %1149 = vmatpush1.msra.mxu0 0.0
      %1150 = vmatprep.subr.mxu0 0.0
      %1151 = vmatpush1.msra.mxu0 0.0
      %1152 = vmatprep.subr.mxu0 0.0
      %1153 = vmatpush1.msra.mxu0 0.0
      %1154 = vmatprep.subr.mxu0 0.0
      %1155 = vmatpush1.msra.mxu0 0.0
      %1156 = vmatprep.subr.mxu0 0.0
      %1157 = vmatpush1.msra.mxu0 0.0
      %1158 = vmatprep.subr.mxu0 0.0
      %1159 = vmatpush1.msra.mxu0 0.0
      %1160 = vmatprep.subr.mxu0 %v1126
      %1161 = vmatpush1.msra.mxu0 %v1124
      %1162 = vmatprep.subr.mxu0 0.0
      %1163 = vmatpush2.msra.mxu0 0.0
      %1164 = vmatprep.subr.mxu0 0.0
      %1165 = vmatpush2.msra.mxu0 0.0
      %1166 = vmatprep.subr.mxu0 0.0
      %1167 = vmatpush2.msra.mxu0 0.0
      %1168 = vmatprep.subr.mxu0 0.0
      %1169 = vmatpush2.msra.mxu0 0.0
      %1170 = vmatprep.subr.mxu0 0.0
      %1171 = vmatpush2.msra.mxu0 0.0
      %1172 = vmatprep.subr.mxu0 0.0
      %1173 = vmatpush2.msra.mxu0 0.0
      %1174 = vmatprep.subr.mxu0 0.0
      %1175 = vmatpush2.msra.mxu0 0.0
      %1176 = vmatprep.subr.mxu0 0.0
      %1177 = vmatpush2.msra.mxu0 0.0
      %1178 = vmatprep.subr.mxu0 0.0
      %1179 = vmatpush2.msra.mxu0 0.0
      %1180 = vmatprep.subr.mxu0 0.0
      %1181 = vmatpush2.msra.mxu0 0.0
      %1182 = vmatprep.subr.mxu0 0.0
      %1183 = vmatpush2.msra.mxu0 0.0
      %1184 = vmatprep.subr.mxu0 0.0
      %1185 = vmatpush2.msra.mxu0 0.0
      %1186 = vmatprep.subr.mxu0 0.0
      %1187 = vmatpush2.msra.mxu0 0.0
      %1188 = vmatprep.subr.mxu0 0.0
      %1189 = vmatpush2.msra.mxu0 0.0
      %1190 = vmatprep.subr.mxu0 0.0
      %1191 = vmatpush2.msra.mxu0 0.0
      %1192 = vmatprep.subr.mxu0 0.0
      %1193 = vmatpush2.msra.mxu0 0.0
      %1194 = vmatprep.mubr.f32.mxu0 0.0
      %1195 = vmatmul.mubr.f32.gmra.mxu0 %v1122
      %v1196 = vpop.f32.mrf.mxu0
      %v1197 = vadd.f32 0.0, %v1196
      %v1198 = vpop.f32.mrf.mxu0
      %v1199 = vadd.f32 0.0, %v1198
      %1200 = vdwg.mxu0
      %1201 = vmatprep.subr.mxu0 0.0
      %1202 = vmatpush1.msra.mxu0 0.0
      %1203 = vmatprep.subr.mxu0 0.0
      %1204 = vmatpush1.msra.mxu0 0.0
      %1205 = vmatprep.subr.mxu0 0.0
      %1206 = vmatpush1.msra.mxu0 0.0
      %1207 = vmatprep.subr.mxu0 0.0
      %1208 = vmatpush1.msra.mxu0 0.0
      %1209 = vmatprep.subr.mxu0 0.0
      %1210 = vmatpush1.msra.mxu0 0.0
      %1211 = vmatprep.subr.mxu0 0.0
      %1212 = vmatpush1.msra.mxu0 0.0
      %1213 = vmatprep.subr.mxu0 0.0
      %1214 = vmatpush1.msra.mxu0 0.0
      %1215 = vmatprep.subr.mxu0 0.0
      %1216 = vmatpush1.msra.mxu0 0.0
      %1217 = vmatprep.subr.mxu0 0.0
      %1218 = vmatpush1.msra.mxu0 0.0
      %1219 = vmatprep.subr.mxu0 0.0
      %1220 = vmatpush1.msra.mxu0 0.0
      %1221 = vmatprep.subr.mxu0 0.0
      %1222 = vmatpush1.msra.mxu0 0.0
      %1223 = vmatprep.subr.mxu0 0.0
      %1224 = vmatpush1.msra.mxu0 0.0
      %1225 = vmatprep.subr.mxu0 0.0
      %1226 = vmatpush1.msra.mxu0 0.0
      %1227 = vmatprep.subr.mxu0 0.0
      %1228 = vmatpush1.msra.mxu0 0.0
      %1229 = vmatprep.subr.mxu0 0.0
      %1230 = vmatpush1.msra.mxu0 0.0
      %1231 = vmatprep.subr.mxu0 0.0
      %1232 = vmatpush1.msra.mxu0 %v1128
      %1233 = vmatprep.subr.mxu0 0.0
      %1234 = vmatpush2.msra.mxu0 0.0
      %1235 = vmatprep.subr.mxu0 0.0
      %1236 = vmatpush2.msra.mxu0 0.0
      %1237 = vmatprep.subr.mxu0 0.0
      %1238 = vmatpush2.msra.mxu0 0.0
      %1239 = vmatprep.subr.mxu0 0.0
      %1240 = vmatpush2.msra.mxu0 0.0
      %1241 = vmatprep.subr.mxu0 0.0
      %1242 = vmatpush2.msra.mxu0 0.0
      %1243 = vmatprep.subr.mxu0 0.0
      %1244 = vmatpush2.msra.mxu0 0.0
      %1245 = vmatprep.subr.mxu0 0.0
      %1246 = vmatpush2.msra.mxu0 0.0
      %1247 = vmatprep.subr.mxu0 0.0
      %1248 = vmatpush2.msra.mxu0 0.0
      %1249 = vmatprep.subr.mxu0 0.0
      %1250 = vmatpush2.msra.mxu0 0.0
      %1251 = vmatprep.subr.mxu0 0.0
      %1252 = vmatpush2.msra.mxu0 0.0
      %1253 = vmatprep.subr.mxu0 0.0
      %1254 = vmatpush2.msra.mxu0 0.0
      %1255 = vmatprep.subr.mxu0 0.0
      %1256 = vmatpush2.msra.mxu0 0.0
      %1257 = vmatprep.subr.mxu0 0.0
      %1258 = vmatpush2.msra.mxu0 0.0
      %1259 = vmatprep.subr.mxu0 0.0
      %1260 = vmatpush2.msra.mxu0 0.0
      %1261 = vmatprep.subr.mxu0 0.0
      %1262 = vmatpush2.msra.mxu0 0.0
      %1263 = vmatprep.subr.mxu0 0.0
      %1264 = vmatpush2.msra.mxu0 0.0
      %1265 = vmatprep.mubr.f32.mxu0 0.0
      %1266 = vmatmul.mubr.f32.gmra.mxu0 %v1122
      %v1267 = vpop.f32.mrf.mxu0
      %v1268 = vadd.f32 0.0, %v1267
      %v1269 = vpop.f32.mrf.mxu0
      %1270 = vdwg.mxu0
      %v1271 = vadd.f32 %v1104, %v1197
      %v1272 = vadd.f32 %v1105, %v1199
      %v1273 = vadd.f32 %v1106, %v1268
      %s1274 = scalar_lea.vmem %s2, 48
      %v1275 = vld [vmem:[%s1274] sm:$0xff]
      %1276 = vrot.lane.b32.xlu0 %v282, 92
      %v1277 = vpop.permute.xlu0 %1276
      %1278 = vrot.lane.b32.xlu0 %v287, 92
      %v1279 = vpop.permute.xlu0 %1278
      %1280 = vrot.lane.b32.xlu0 %v283, 92
      %v1281 = vpop.permute.xlu0 %1280
      %1282 = vrot.lane.b32.xlu0 %v284, 92
      %v1283 = vpop.permute.xlu0 %1282
      %vm1284 = vcmask 752640
      %v1285 = vsel %vm1284, %v1277, %v1279
      %v1286 = vsel %vm1284, %v1279, %v1281
      %v1287 = vsel %vm1284, %v1281, %v1283
      %v1289 = vsel %vm304, %v1275, 0
      %v1291 = vsel %vm308, %v1285, 0
      %v1293 = vsel %vm308, %v1286, 0
      %v1295 = vsel %vm308, %v1287, 0
      %1297 = vmatprep.subr.mxu0 0.0
      %1298 = vmatpush1.msra.mxu0 0.0
      %1299 = vmatprep.subr.mxu0 0.0
      %1300 = vmatpush1.msra.mxu0 0.0
      %1301 = vmatprep.subr.mxu0 0.0
      %1302 = vmatpush1.msra.mxu0 0.0
      %1303 = vmatprep.subr.mxu0 0.0
      %1304 = vmatpush1.msra.mxu0 0.0
      %1305 = vmatprep.subr.mxu0 0.0
      %1306 = vmatpush1.msra.mxu0 0.0
      %1307 = vmatprep.subr.mxu0 0.0
      %1308 = vmatpush1.msra.mxu0 0.0
      %1309 = vmatprep.subr.mxu0 0.0
      %1310 = vmatpush1.msra.mxu0 0.0
      %1311 = vmatprep.subr.mxu0 0.0
      %1312 = vmatpush1.msra.mxu0 0.0
      %1313 = vmatprep.subr.mxu0 0.0
      %1314 = vmatpush1.msra.mxu0 0.0
      %1315 = vmatprep.subr.mxu0 0.0
      %1316 = vmatpush1.msra.mxu0 0.0
      %1317 = vmatprep.subr.mxu0 0.0
      %1318 = vmatpush1.msra.mxu0 0.0
      %1319 = vmatprep.subr.mxu0 0.0
      %1320 = vmatpush1.msra.mxu0 0.0
      %1321 = vmatprep.subr.mxu0 0.0
      %1322 = vmatpush1.msra.mxu0 0.0
      %1323 = vmatprep.subr.mxu0 0.0
      %1324 = vmatpush1.msra.mxu0 0.0
      %1325 = vmatprep.subr.mxu0 0.0
      %1326 = vmatpush1.msra.mxu0 0.0
      %1327 = vmatprep.subr.mxu0 %v1293
      %1328 = vmatpush1.msra.mxu0 %v1291
      %1329 = vmatprep.subr.mxu0 0.0
      %1330 = vmatpush2.msra.mxu0 0.0
      %1331 = vmatprep.subr.mxu0 0.0
      %1332 = vmatpush2.msra.mxu0 0.0
      %1333 = vmatprep.subr.mxu0 0.0
      %1334 = vmatpush2.msra.mxu0 0.0
      %1335 = vmatprep.subr.mxu0 0.0
      %1336 = vmatpush2.msra.mxu0 0.0
      %1337 = vmatprep.subr.mxu0 0.0
      %1338 = vmatpush2.msra.mxu0 0.0
      %1339 = vmatprep.subr.mxu0 0.0
      %1340 = vmatpush2.msra.mxu0 0.0
      %1341 = vmatprep.subr.mxu0 0.0
      %1342 = vmatpush2.msra.mxu0 0.0
      %1343 = vmatprep.subr.mxu0 0.0
      %1344 = vmatpush2.msra.mxu0 0.0
      %1345 = vmatprep.subr.mxu0 0.0
      %1346 = vmatpush2.msra.mxu0 0.0
      %1347 = vmatprep.subr.mxu0 0.0
      %1348 = vmatpush2.msra.mxu0 0.0
      %1349 = vmatprep.subr.mxu0 0.0
      %1350 = vmatpush2.msra.mxu0 0.0
      %1351 = vmatprep.subr.mxu0 0.0
      %1352 = vmatpush2.msra.mxu0 0.0
      %1353 = vmatprep.subr.mxu0 0.0
      %1354 = vmatpush2.msra.mxu0 0.0
      %1355 = vmatprep.subr.mxu0 0.0
      %1356 = vmatpush2.msra.mxu0 0.0
      %1357 = vmatprep.subr.mxu0 0.0
      %1358 = vmatpush2.msra.mxu0 0.0
      %1359 = vmatprep.subr.mxu0 0.0
      %1360 = vmatpush2.msra.mxu0 0.0
      %1361 = vmatprep.mubr.f32.mxu0 0.0
      %1362 = vmatmul.mubr.f32.gmra.mxu0 %v1289
      %v1363 = vpop.f32.mrf.mxu0
      %v1364 = vadd.f32 0.0, %v1363
      %v1365 = vpop.f32.mrf.mxu0
      %v1366 = vadd.f32 0.0, %v1365
      %1367 = vdwg.mxu0
      %1368 = vmatprep.subr.mxu0 0.0
      %1369 = vmatpush1.msra.mxu0 0.0
      %1370 = vmatprep.subr.mxu0 0.0
      %1371 = vmatpush1.msra.mxu0 0.0
      %1372 = vmatprep.subr.mxu0 0.0
      %1373 = vmatpush1.msra.mxu0 0.0
      %1374 = vmatprep.subr.mxu0 0.0
      %1375 = vmatpush1.msra.mxu0 0.0
      %1376 = vmatprep.subr.mxu0 0.0
      %1377 = vmatpush1.msra.mxu0 0.0
      %1378 = vmatprep.subr.mxu0 0.0
      %1379 = vmatpush1.msra.mxu0 0.0
      %1380 = vmatprep.subr.mxu0 0.0
      %1381 = vmatpush1.msra.mxu0 0.0
      %1382 = vmatprep.subr.mxu0 0.0
      %1383 = vmatpush1.msra.mxu0 0.0
      %1384 = vmatprep.subr.mxu0 0.0
      %1385 = vmatpush1.msra.mxu0 0.0
      %1386 = vmatprep.subr.mxu0 0.0
      %1387 = vmatpush1.msra.mxu0 0.0
      %1388 = vmatprep.subr.mxu0 0.0
      %1389 = vmatpush1.msra.mxu0 0.0
      %1390 = vmatprep.subr.mxu0 0.0
      %1391 = vmatpush1.msra.mxu0 0.0
      %1392 = vmatprep.subr.mxu0 0.0
      %1393 = vmatpush1.msra.mxu0 0.0
      %1394 = vmatprep.subr.mxu0 0.0
      %1395 = vmatpush1.msra.mxu0 0.0
      %1396 = vmatprep.subr.mxu0 0.0
      %1397 = vmatpush1.msra.mxu0 0.0
      %1398 = vmatprep.subr.mxu0 0.0
      %1399 = vmatpush1.msra.mxu0 %v1295
      %1400 = vmatprep.subr.mxu0 0.0
      %1401 = vmatpush2.msra.mxu0 0.0
      %1402 = vmatprep.subr.mxu0 0.0
      %1403 = vmatpush2.msra.mxu0 0.0
      %1404 = vmatprep.subr.mxu0 0.0
      %1405 = vmatpush2.msra.mxu0 0.0
      %1406 = vmatprep.subr.mxu0 0.0
      %1407 = vmatpush2.msra.mxu0 0.0
      %1408 = vmatprep.subr.mxu0 0.0
      %1409 = vmatpush2.msra.mxu0 0.0
      %1410 = vmatprep.subr.mxu0 0.0
      %1411 = vmatpush2.msra.mxu0 0.0
      %1412 = vmatprep.subr.mxu0 0.0
      %1413 = vmatpush2.msra.mxu0 0.0
      %1414 = vmatprep.subr.mxu0 0.0
      %1415 = vmatpush2.msra.mxu0 0.0
      %1416 = vmatprep.subr.mxu0 0.0
      %1417 = vmatpush2.msra.mxu0 0.0
      %1418 = vmatprep.subr.mxu0 0.0
      %1419 = vmatpush2.msra.mxu0 0.0
      %1420 = vmatprep.subr.mxu0 0.0
      %1421 = vmatpush2.msra.mxu0 0.0
      %1422 = vmatprep.subr.mxu0 0.0
      %1423 = vmatpush2.msra.mxu0 0.0
      %1424 = vmatprep.subr.mxu0 0.0
      %1425 = vmatpush2.msra.mxu0 0.0
      %1426 = vmatprep.subr.mxu0 0.0
      %1427 = vmatpush2.msra.mxu0 0.0
      %1428 = vmatprep.subr.mxu0 0.0
      %1429 = vmatpush2.msra.mxu0 0.0
      %1430 = vmatprep.subr.mxu0 0.0
      %1431 = vmatpush2.msra.mxu0 0.0
      %1432 = vmatprep.mubr.f32.mxu0 0.0
      %1433 = vmatmul.mubr.f32.gmra.mxu0 %v1289
      %v1434 = vpop.f32.mrf.mxu0
      %v1435 = vadd.f32 0.0, %v1434
      %v1436 = vpop.f32.mrf.mxu0
      %1437 = vdwg.mxu0
      %v1438 = vadd.f32 %v1271, %v1364
      %v1439 = vadd.f32 %v1272, %v1366
      %v1440 = vadd.f32 %v1273, %v1435
      %s1441 = scalar_lea.vmem %s2, 56
      %v1442 = vld [vmem:[%s1441] sm:$0xff]
      %1443 = vrot.lane.b32.xlu0 %v282, 91
      %v1444 = vpop.permute.xlu0 %1443
      %1445 = vrot.lane.b32.xlu0 %v287, 91
      %v1446 = vpop.permute.xlu0 %1445
      %1447 = vrot.lane.b32.xlu0 %v283, 91
      %v1448 = vpop.permute.xlu0 %1447
      %1449 = vrot.lane.b32.xlu0 %v284, 91
      %v1450 = vpop.permute.xlu0 %1449
      %vm1451 = vcmask 744448
      %v1452 = vsel %vm1451, %v1444, %v1446
      %v1453 = vsel %vm1451, %v1446, %v1448
      %v1454 = vsel %vm1451, %v1448, %v1450
      %v1456 = vsel %vm304, %v1442, 0
      %v1458 = vsel %vm308, %v1452, 0
      %v1460 = vsel %vm308, %v1453, 0
      %v1462 = vsel %vm308, %v1454, 0
      %1464 = vmatprep.subr.mxu0 0.0
      %1465 = vmatpush1.msra.mxu0 0.0
      %1466 = vmatprep.subr.mxu0 0.0
      %1467 = vmatpush1.msra.mxu0 0.0
      %1468 = vmatprep.subr.mxu0 0.0
      %1469 = vmatpush1.msra.mxu0 0.0
      %1470 = vmatprep.subr.mxu0 0.0
      %1471 = vmatpush1.msra.mxu0 0.0
      %1472 = vmatprep.subr.mxu0 0.0
      %1473 = vmatpush1.msra.mxu0 0.0
      %1474 = vmatprep.subr.mxu0 0.0
      %1475 = vmatpush1.msra.mxu0 0.0
      %1476 = vmatprep.subr.mxu0 0.0
      %1477 = vmatpush1.msra.mxu0 0.0
      %1478 = vmatprep.subr.mxu0 0.0
      %1479 = vmatpush1.msra.mxu0 0.0
      %1480 = vmatprep.subr.mxu0 0.0
      %1481 = vmatpush1.msra.mxu0 0.0
      %1482 = vmatprep.subr.mxu0 0.0
      %1483 = vmatpush1.msra.mxu0 0.0
      %1484 = vmatprep.subr.mxu0 0.0
      %1485 = vmatpush1.msra.mxu0 0.0
      %1486 = vmatprep.subr.mxu0 0.0
      %1487 = vmatpush1.msra.mxu0 0.0
      %1488 = vmatprep.subr.mxu0 0.0
      %1489 = vmatpush1.msra.mxu0 0.0
      %1490 = vmatprep.subr.mxu0 0.0
      %1491 = vmatpush1.msra.mxu0 0.0
      %1492 = vmatprep.subr.mxu0 0.0
      %1493 = vmatpush1.msra.mxu0 0.0
      %1494 = vmatprep.subr.mxu0 %v1460
      %1495 = vmatpush1.msra.mxu0 %v1458
      %1496 = vmatprep.subr.mxu0 0.0
      %1497 = vmatpush2.msra.mxu0 0.0
      %1498 = vmatprep.subr.mxu0 0.0
      %1499 = vmatpush2.msra.mxu0 0.0
      %1500 = vmatprep.subr.mxu0 0.0
      %1501 = vmatpush2.msra.mxu0 0.0
      %1502 = vmatprep.subr.mxu0 0.0
      %1503 = vmatpush2.msra.mxu0 0.0
      %1504 = vmatprep.subr.mxu0 0.0
      %1505 = vmatpush2.msra.mxu0 0.0
      %1506 = vmatprep.subr.mxu0 0.0
      %1507 = vmatpush2.msra.mxu0 0.0
      %1508 = vmatprep.subr.mxu0 0.0
      %1509 = vmatpush2.msra.mxu0 0.0
      %1510 = vmatprep.subr.mxu0 0.0
      %1511 = vmatpush2.msra.mxu0 0.0
      %1512 = vmatprep.subr.mxu0 0.0
      %1513 = vmatpush2.msra.mxu0 0.0
      %1514 = vmatprep.subr.mxu0 0.0
      %1515 = vmatpush2.msra.mxu0 0.0
      %1516 = vmatprep.subr.mxu0 0.0
      %1517 = vmatpush2.msra.mxu0 0.0
      %1518 = vmatprep.subr.mxu0 0.0
      %1519 = vmatpush2.msra.mxu0 0.0
      %1520 = vmatprep.subr.mxu0 0.0
      %1521 = vmatpush2.msra.mxu0 0.0
      %1522 = vmatprep.subr.mxu0 0.0
      %1523 = vmatpush2.msra.mxu0 0.0
      %1524 = vmatprep.subr.mxu0 0.0
      %1525 = vmatpush2.msra.mxu0 0.0
      %1526 = vmatprep.subr.mxu0 0.0
      %1527 = vmatpush2.msra.mxu0 0.0
      %1528 = vmatprep.mubr.f32.mxu0 0.0
      %1529 = vmatmul.mubr.f32.gmra.mxu0 %v1456
      %v1530 = vpop.f32.mrf.mxu0
      %v1531 = vadd.f32 0.0, %v1530
      %v1532 = vpop.f32.mrf.mxu0
      %v1533 = vadd.f32 0.0, %v1532
      %1534 = vdwg.mxu0
      %1535 = vmatprep.subr.mxu0 0.0
      %1536 = vmatpush1.msra.mxu0 0.0
      %1537 = vmatprep.subr.mxu0 0.0
      %1538 = vmatpush1.msra.mxu0 0.0
      %1539 = vmatprep.subr.mxu0 0.0
      %1540 = vmatpush1.msra.mxu0 0.0
      %1541 = vmatprep.subr.mxu0 0.0
      %1542 = vmatpush1.msra.mxu0 0.0
      %1543 = vmatprep.subr.mxu0 0.0
      %1544 = vmatpush1.msra.mxu0 0.0
      %1545 = vmatprep.subr.mxu0 0.0
      %1546 = vmatpush1.msra.mxu0 0.0
      %1547 = vmatprep.subr.mxu0 0.0
      %1548 = vmatpush1.msra.mxu0 0.0
      %1549 = vmatprep.subr.mxu0 0.0
      %1550 = vmatpush1.msra.mxu0 0.0
      %1551 = vmatprep.subr.mxu0 0.0
      %1552 = vmatpush1.msra.mxu0 0.0
      %1553 = vmatprep.subr.mxu0 0.0
      %1554 = vmatpush1.msra.mxu0 0.0
      %1555 = vmatprep.subr.mxu0 0.0
      %1556 = vmatpush1.msra.mxu0 0.0
      %1557 = vmatprep.subr.mxu0 0.0
      %1558 = vmatpush1.msra.mxu0 0.0
      %1559 = vmatprep.subr.mxu0 0.0
      %1560 = vmatpush1.msra.mxu0 0.0
      %1561 = vmatprep.subr.mxu0 0.0
      %1562 = vmatpush1.msra.mxu0 0.0
      %1563 = vmatprep.subr.mxu0 0.0
      %1564 = vmatpush1.msra.mxu0 0.0
      %1565 = vmatprep.subr.mxu0 0.0
      %1566 = vmatpush1.msra.mxu0 %v1462
      %1567 = vmatprep.subr.mxu0 0.0
      %1568 = vmatpush2.msra.mxu0 0.0
      %1569 = vmatprep.subr.mxu0 0.0
      %1570 = vmatpush2.msra.mxu0 0.0
      %1571 = vmatprep.subr.mxu0 0.0
      %1572 = vmatpush2.msra.mxu0 0.0
      %1573 = vmatprep.subr.mxu0 0.0
      %1574 = vmatpush2.msra.mxu0 0.0
      %1575 = vmatprep.subr.mxu0 0.0
      %1576 = vmatpush2.msra.mxu0 0.0
      %1577 = vmatprep.subr.mxu0 0.0
      %1578 = vmatpush2.msra.mxu0 0.0
      %1579 = vmatprep.subr.mxu0 0.0
      %1580 = vmatpush2.msra.mxu0 0.0
      %1581 = vmatprep.subr.mxu0 0.0
      %1582 = vmatpush2.msra.mxu0 0.0
      %1583 = vmatprep.subr.mxu0 0.0
      %1584 = vmatpush2.msra.mxu0 0.0
      %1585 = vmatprep.subr.mxu0 0.0
      %1586 = vmatpush2.msra.mxu0 0.0
      %1587 = vmatprep.subr.mxu0 0.0
      %1588 = vmatpush2.msra.mxu0 0.0
      %1589 = vmatprep.subr.mxu0 0.0
      %1590 = vmatpush2.msra.mxu0 0.0
      %1591 = vmatprep.subr.mxu0 0.0
      %1592 = vmatpush2.msra.mxu0 0.0
      %1593 = vmatprep.subr.mxu0 0.0
      %1594 = vmatpush2.msra.mxu0 0.0
      %1595 = vmatprep.subr.mxu0 0.0
      %1596 = vmatpush2.msra.mxu0 0.0
      %1597 = vmatprep.subr.mxu0 0.0
      %1598 = vmatpush2.msra.mxu0 0.0
      %1599 = vmatprep.mubr.f32.mxu0 0.0
      %1600 = vmatmul.mubr.f32.gmra.mxu0 %v1456
      %v1601 = vpop.f32.mrf.mxu0
      %v1602 = vadd.f32 0.0, %v1601
      %v1603 = vpop.f32.mrf.mxu0
      %1604 = vdwg.mxu0
      %v1605 = vadd.f32 %v1438, %v1531
      %v1606 = vadd.f32 %v1439, %v1533
      %v1607 = vadd.f32 %v1440, %v1602
      %s1608 = scalar_lea.vmem %s2, 64
      %v1609 = vld [vmem:[%s1608] sm:$0xff]
      %1610 = vrot.lane.b32.xlu0 %v282, 90
      %v1611 = vpop.permute.xlu0 %1610
      %1612 = vrot.lane.b32.xlu0 %v287, 90
      %v1613 = vpop.permute.xlu0 %1612
      %1614 = vrot.lane.b32.xlu0 %v283, 90
      %v1615 = vpop.permute.xlu0 %1614
      %1616 = vrot.lane.b32.xlu0 %v284, 90
      %v1617 = vpop.permute.xlu0 %1616
      %vm1618 = vcmask 736256
      %v1619 = vsel %vm1618, %v1611, %v1613
      %v1620 = vsel %vm1618, %v1613, %v1615
      %v1621 = vsel %vm1618, %v1615, %v1617
      %v1623 = vsel %vm304, %v1609, 0
      %v1625 = vsel %vm308, %v1619, 0
      %v1627 = vsel %vm308, %v1620, 0
      %v1629 = vsel %vm308, %v1621, 0
      %1631 = vmatprep.subr.mxu0 0.0
      %1632 = vmatpush1.msra.mxu0 0.0
      %1633 = vmatprep.subr.mxu0 0.0
      %1634 = vmatpush1.msra.mxu0 0.0
      %1635 = vmatprep.subr.mxu0 0.0
      %1636 = vmatpush1.msra.mxu0 0.0
      %1637 = vmatprep.subr.mxu0 0.0
      %1638 = vmatpush1.msra.mxu0 0.0
      %1639 = vmatprep.subr.mxu0 0.0
      %1640 = vmatpush1.msra.mxu0 0.0
      %1641 = vmatprep.subr.mxu0 0.0
      %1642 = vmatpush1.msra.mxu0 0.0
      %1643 = vmatprep.subr.mxu0 0.0
      %1644 = vmatpush1.msra.mxu0 0.0
      %1645 = vmatprep.subr.mxu0 0.0
      %1646 = vmatpush1.msra.mxu0 0.0
      %1647 = vmatprep.subr.mxu0 0.0
      %1648 = vmatpush1.msra.mxu0 0.0
      %1649 = vmatprep.subr.mxu0 0.0
      %1650 = vmatpush1.msra.mxu0 0.0
      %1651 = vmatprep.subr.mxu0 0.0
      %1652 = vmatpush1.msra.mxu0 0.0
      %1653 = vmatprep.subr.mxu0 0.0
      %1654 = vmatpush1.msra.mxu0 0.0
      %1655 = vmatprep.subr.mxu0 0.0
      %1656 = vmatpush1.msra.mxu0 0.0
      %1657 = vmatprep.subr.mxu0 0.0
      %1658 = vmatpush1.msra.mxu0 0.0
      %1659 = vmatprep.subr.mxu0 0.0
      %1660 = vmatpush1.msra.mxu0 0.0
      %1661 = vmatprep.subr.mxu0 %v1627
      %1662 = vmatpush1.msra.mxu0 %v1625
      %1663 = vmatprep.subr.mxu0 0.0
      %1664 = vmatpush2.msra.mxu0 0.0
      %1665 = vmatprep.subr.mxu0 0.0
      %1666 = vmatpush2.msra.mxu0 0.0
      %1667 = vmatprep.subr.mxu0 0.0
      %1668 = vmatpush2.msra.mxu0 0.0
      %1669 = vmatprep.subr.mxu0 0.0
      %1670 = vmatpush2.msra.mxu0 0.0
      %1671 = vmatprep.subr.mxu0 0.0
      %1672 = vmatpush2.msra.mxu0 0.0
      %1673 = vmatprep.subr.mxu0 0.0
      %1674 = vmatpush2.msra.mxu0 0.0
      %1675 = vmatprep.subr.mxu0 0.0
      %1676 = vmatpush2.msra.mxu0 0.0
      %1677 = vmatprep.subr.mxu0 0.0
      %1678 = vmatpush2.msra.mxu0 0.0
      %1679 = vmatprep.subr.mxu0 0.0
      %1680 = vmatpush2.msra.mxu0 0.0
      %1681 = vmatprep.subr.mxu0 0.0
      %1682 = vmatpush2.msra.mxu0 0.0
      %1683 = vmatprep.subr.mxu0 0.0
      %1684 = vmatpush2.msra.mxu0 0.0
      %1685 = vmatprep.subr.mxu0 0.0
      %1686 = vmatpush2.msra.mxu0 0.0
      %1687 = vmatprep.subr.mxu0 0.0
      %1688 = vmatpush2.msra.mxu0 0.0
      %1689 = vmatprep.subr.mxu0 0.0
      %1690 = vmatpush2.msra.mxu0 0.0
      %1691 = vmatprep.subr.mxu0 0.0
      %1692 = vmatpush2.msra.mxu0 0.0
      %1693 = vmatprep.subr.mxu0 0.0
      %1694 = vmatpush2.msra.mxu0 0.0
      %1695 = vmatprep.mubr.f32.mxu0 0.0
      %1696 = vmatmul.mubr.f32.gmra.mxu0 %v1623
      %v1697 = vpop.f32.mrf.mxu0
      %v1698 = vadd.f32 0.0, %v1697
      %v1699 = vpop.f32.mrf.mxu0
      %v1700 = vadd.f32 0.0, %v1699
      %1701 = vdwg.mxu0
      %1702 = vmatprep.subr.mxu0 0.0
      %1703 = vmatpush1.msra.mxu0 0.0
      %1704 = vmatprep.subr.mxu0 0.0
      %1705 = vmatpush1.msra.mxu0 0.0
      %1706 = vmatprep.subr.mxu0 0.0
      %1707 = vmatpush1.msra.mxu0 0.0
      %1708 = vmatprep.subr.mxu0 0.0
      %1709 = vmatpush1.msra.mxu0 0.0
      %1710 = vmatprep.subr.mxu0 0.0
      %1711 = vmatpush1.msra.mxu0 0.0
      %1712 = vmatprep.subr.mxu0 0.0
      %1713 = vmatpush1.msra.mxu0 0.0
      %1714 = vmatprep.subr.mxu0 0.0
      %1715 = vmatpush1.msra.mxu0 0.0
      %1716 = vmatprep.subr.mxu0 0.0
      %1717 = vmatpush1.msra.mxu0 0.0
      %1718 = vmatprep.subr.mxu0 0.0
      %1719 = vmatpush1.msra.mxu0 0.0
      %1720 = vmatprep.subr.mxu0 0.0
      %1721 = vmatpush1.msra.mxu0 0.0
      %1722 = vmatprep.subr.mxu0 0.0
      %1723 = vmatpush1.msra.mxu0 0.0
      %1724 = vmatprep.subr.mxu0 0.0
      %1725 = vmatpush1.msra.mxu0 0.0
      %1726 = vmatprep.subr.mxu0 0.0
      %1727 = vmatpush1.msra.mxu0 0.0
      %1728 = vmatprep.subr.mxu0 0.0
      %1729 = vmatpush1.msra.mxu0 0.0
      %1730 = vmatprep.subr.mxu0 0.0
      %1731 = vmatpush1.msra.mxu0 0.0
      %1732 = vmatprep.subr.mxu0 0.0
      %1733 = vmatpush1.msra.mxu0 %v1629
      %1734 = vmatprep.subr.mxu0 0.0
      %1735 = vmatpush2.msra.mxu0 0.0
      %1736 = vmatprep.subr.mxu0 0.0
      %1737 = vmatpush2.msra.mxu0 0.0
      %1738 = vmatprep.subr.mxu0 0.0
      %1739 = vmatpush2.msra.mxu0 0.0
      %1740 = vmatprep.subr.mxu0 0.0
      %1741 = vmatpush2.msra.mxu0 0.0
      %1742 = vmatprep.subr.mxu0 0.0
      %1743 = vmatpush2.msra.mxu0 0.0
      %1744 = vmatprep.subr.mxu0 0.0
      %1745 = vmatpush2.msra.mxu0 0.0
      %1746 = vmatprep.subr.mxu0 0.0
      %1747 = vmatpush2.msra.mxu0 0.0
      %1748 = vmatprep.subr.mxu0 0.0
      %1749 = vmatpush2.msra.mxu0 0.0
      %1750 = vmatprep.subr.mxu0 0.0
      %1751 = vmatpush2.msra.mxu0 0.0
      %1752 = vmatprep.subr.mxu0 0.0
      %1753 = vmatpush2.msra.mxu0 0.0
      %1754 = vmatprep.subr.mxu0 0.0
      %1755 = vmatpush2.msra.mxu0 0.0
      %1756 = vmatprep.subr.mxu0 0.0
      %1757 = vmatpush2.msra.mxu0 0.0
      %1758 = vmatprep.subr.mxu0 0.0
      %1759 = vmatpush2.msra.mxu0 0.0
      %1760 = vmatprep.subr.mxu0 0.0
      %1761 = vmatpush2.msra.mxu0 0.0
      %1762 = vmatprep.subr.mxu0 0.0
      %1763 = vmatpush2.msra.mxu0 0.0
      %1764 = vmatprep.subr.mxu0 0.0
      %1765 = vmatpush2.msra.mxu0 0.0
      %1766 = vmatprep.mubr.f32.mxu0 0.0
      %1767 = vmatmul.mubr.f32.gmra.mxu0 %v1623
      %v1768 = vpop.f32.mrf.mxu0
      %v1769 = vadd.f32 0.0, %v1768
      %v1770 = vpop.f32.mrf.mxu0
      %1771 = vdwg.mxu0
      %v1772 = vadd.f32 %v1605, %v1698
      %v1773 = vadd.f32 %v1606, %v1700
      %v1774 = vadd.f32 %v1607, %v1769
      %v1775 = vld [vmem:[%s3] sm:$0xff]
      %1777 = vset.pattern.permute.xlu0 0
      %1778 = vperm.xlu0 %1777, %v1775
      %v1779 = vpop.permute.xlu0 %1778
      %v1781 = vadd.f32 %v1772, %v1779
      %v1782 = vadd.f32 %v1773, %v1779
      %v1783 = vadd.f32 %v1774, %v1779
      %1784 = vst [vmem:[%s280] sm:$0xff] %v1781
      %1785 = vst [vmem:[%s280 + $0x8] sm:$0xff] %v1782
      %1786 = vst [vmem:[%s280 + $0x10] sm:$0xff] %v1783
      %s1787 = smul.u32 3, %s20
      %p1788 = scmp.lt.s32.totalorder %s19, 1
      %s1789 = scalar_select %p1788, %s19, 1
      %p1790 = scmp.lt.s32.totalorder %s1787, 2
      %s1791 = scalar_select %p1790, %s1787, 2
      %s1792 = smul.addr %s1789, 3
      %s1793 = sadd.s32 %s1791, %s1792
      %s1794 = smul.addr %s1793, 8
      %s1795 = scalar_lea.vmem %s4, %s1794
      // Predicated region
      $region37: #{basic_conv2d_folded.1} parent=35 // pred_check
        %p1796 = pneg %p149
      $region38: #{basic_conv2d_folded.1} parent=35 // pred_check_branch
        %1798 = sbr.rel (%p1796) target = $region40
      $region39: #{basic_conv2d_folded.1} parent=35 // pred_region
        %s1799 = smul.u32 3, %s20
      $region40: #{basic_conv2d_folded.1} parent=35 // pred_fallthru
        _
    $region36: #{basic_conv2d_folded.1} parent=5 // pred_fallthru
      _
    %p1800 = scmp.le.s32.totalorder 2, %s10
    // Predicated region
    $region41: #{basic_conv2d_folded.1} parent=5 // pred_check
      %p1801 = pneg %p1800
    $region42: #{basic_conv2d_folded.1} parent=5 // pred_check_branch
      %1803 = sbr.rel (%p1801) target = $region44
    $region43: #{basic_conv2d_folded.1} parent=5 // pred_region
      %s1804 = ssub.s32 %s10, 2
      // Predicated region
      $region45: #{basic_conv2d_folded.1} parent=43 // pred_check
        %p1805 = pneg %p155
      $region46: #{basic_conv2d_folded.1} parent=43 // pred_check_branch
        %1807 = sbr.rel (%p1805) target = $region48
      $region47: #{basic_conv2d_folded.1} parent=43 // pred_region
        %s1808 = smul.u32 3, %s22
        %p1809 = scmp.lt.s32.totalorder %s21, 1
        %s1810 = scalar_select %p1809, %s21, 1
        %p1811 = scmp.lt.s32.totalorder %s1808, 2
        %s1812 = scalar_select %p1811, %s1808, 2
        %s1813 = smul.addr %s1810, 3
        %s1814 = sadd.s32 %s1812, %s1813
        %s1815 = smul.addr %s1814, 8
        %s1816 = scalar_lea.vmem %s4, %s1815
      $region48: #{basic_conv2d_folded.1} parent=43 // pred_fallthru
        _
    $region44: #{basic_conv2d_folded.1} parent=5 // pred_fallthru
      _
  $region6: #{basic_conv2d_folded.1} parent=0 // loop_footer
    %s14 = sadd.s32 1, %s10
  $region7: #{basic_conv2d_folded.1} parent=0 // loop_footer_branch
    %9 = sbr.rel target = $region3
  $region8: #{basic_conv2d_folded.1} parent=0 // loop_exit
    _

</llo_original>
